<compile_context>
chip_gen: v5e
topology: v5e:2x2
jax: 0.10.0
libtpu: 0.0.40
codegen_flags: <defaults>
</compile_context>

<pallas_src>
import jax
import jax.numpy as jnp
from jax.experimental import pallas as pl
from jax.experimental.pallas import tpu as pltpu


# ----------------------------------------------------------------------------
# Kernel
# ----------------------------------------------------------------------------
def _fused_kernel(x_ref, wbb_ref, bbb_ref, w1_hbm, b1_ref, w2_hbm, b2_ref,
                  w3_hbm, b3_ref, g_ref, beta_ref, o_ref,
                  w1_vmem, w2_vmem, w3_vmem, sem):
    # Kick off proj-weight DMA (HBM -> VMEM) so it hides behind the backbone
    # matmul rather than extending the serial prologue.
    cp1 = pltpu.make_async_copy(w1_hbm, w1_vmem, sem.at[0]); cp1.start()
    cp2 = pltpu.make_async_copy(w2_hbm, w2_vmem, sem.at[1]); cp2.start()
    cp3 = pltpu.make_async_copy(w3_hbm, w3_vmem, sem.at[2]); cp3.start()

    bsz_p = o_ref.shape[0]
    feat = wbb_ref.shape[1]
    n_img = x_ref.shape[0] // bsz_p

    # TODO(synk): the real module uses a pretrained torchvision backbone
    # (resnet18/34/50 or vit_b_16), not defined in the given source; this
    # deterministic linear+ReLU feature extractor stands in for it.
    #
    # Single stacked backbone matmul over all images (rows are image-major:
    # row i*bsz_p + b = image i of padded batch row b).
    xb = x_ref[...].astype(jnp.bfloat16)
    bb = jnp.dot(xb, wbb_ref[...], preferred_element_type=jnp.float32)
    bb = jnp.maximum(bb + bbb_ref[...], 0.0)          # (n_img*bsz_p, feat) f32

    # Regroup to torch's stack/split/permute/reshape layout fully in registers:
    # emb[b] = [feat(img0,b), feat(img1,b), ..., feat(img_{n-1},b)].
    # Static 8-sublane slices + lane-aligned (128-wide) concat — no VMEM
    # scratch round-trip.
    emb = jnp.concatenate(
        [bb[i * bsz_p:(i + 1) * bsz_p, :] for i in range(n_img)], axis=-1)

    # ImageProjModel: relu(proj1) -> relu(proj2) -> proj3 -> LayerNorm.
    # NOTE: activations are cast to bf16 for the MXU; vs an f32 torch
    # reference this is tolerance-level, not bit-exact.
    cp1.wait()
    h = jnp.dot(emb.astype(jnp.bfloat16), w1_vmem[...],
                preferred_element_type=jnp.float32) + b1_ref[...]
    h = jnp.maximum(h, 0.0)

    cp2.wait()
    h = jnp.dot(h.astype(jnp.bfloat16), w2_vmem[...],
                preferred_element_type=jnp.float32) + b2_ref[...]
    h = jnp.maximum(h, 0.0)

    cp3.wait()
    t = jnp.dot(h.astype(jnp.bfloat16), w3_vmem[...],
                preferred_element_type=jnp.float32) + b3_ref[...]

    # torch.nn.LayerNorm semantics: biased variance, eps=1e-5, affine.
    mean = jnp.mean(t, axis=-1, keepdims=True)
    var = jnp.mean((t - mean) ** 2, axis=-1, keepdims=True)
    t = (t - mean) * jax.lax.rsqrt(var + 1e-5)
    o_ref[...] = (t * g_ref[...] + beta_ref[...]).astype(o_ref.dtype)


def _fused_call(x2d, bsz_p, wbb, bbb, w1, b1, w2, b2, w3, b3, g, beta):
    proj_in, inter = w1.shape
    out_dim = w3.shape[1]

    vmem = pl.BlockSpec(memory_space=pltpu.MemorySpace.VMEM)
    hbm = pl.BlockSpec(memory_space=pl.ANY)   # manual DMA inside the kernel

    return pl.pallas_call(
        _fused_kernel,
        out_shape=jax.ShapeDtypeStruct((bsz_p, out_dim), jnp.float32),
        # grid-less call: whole arrays, no pipeline machinery for a 1-step grid.
        in_specs=[vmem,        # x
                  vmem, vmem,  # backbone w, b
                  hbm, vmem,   # w1 (manual DMA), b1
                  hbm, vmem,   # w2 (manual DMA), b2
                  hbm, vmem,   # w3 (manual DMA), b3
                  vmem, vmem], # LayerNorm gamma, beta
        out_specs=vmem,
        scratch_shapes=[
            pltpu.VMEM((proj_in, inter), jnp.bfloat16),   # w1 landing buffer
            pltpu.VMEM((inter, inter), jnp.bfloat16),     # w2 landing buffer
            pltpu.VMEM((inter, out_dim), jnp.bfloat16),   # w3 landing buffer
            pltpu.SemaphoreType.DMA((3,)),
        ],
        compiler_params=pltpu.CompilerParams(
            vmem_limit_bytes=32 * 1024 * 1024,   # footprint ~2.5 MiB; fits v7x
        ),
    )(x2d, wbb, bbb, w1, b1, w2, b2, w3, b3, g, beta)


# ----------------------------------------------------------------------------
# Model wrapper (parameter setup + pad/regroup glue in JAX)
# ----------------------------------------------------------------------------
class ImageEncoderPallas:
    def __init__(self, batch=5, output_dim=128, input_channels=128,
                 image_chw=(4, 16, 16), intermediate_dim=512, key=None):
        self.batch = batch                      # number of images per sample
        self.output_dim = output_dim
        self.input_channels = input_channels    # backbone feature dim
        self.image_chw = image_chw
        self.intermediate_dim = intermediate_dim

        if key is None:
            key = jax.random.PRNGKey(42)
        keys = jax.random.split(key, 8)

        def linear_init(kw, kb, fan_in, fan_out):
            # torch.nn.Linear default init: U(-1/sqrt(fan_in), 1/sqrt(fan_in))
            bound = 1.0 / jnp.sqrt(float(fan_in))
            wgt = jax.random.uniform(kw, (fan_in, fan_out), jnp.float32, -bound, bound)
            bias = jax.random.uniform(kb, (1, fan_out), jnp.float32, -bound, bound)
            # weights bf16 (weight DMA dominates; portable across v5e/v6e/v7x),
            # biases stay f32.
            return wgt.astype(jnp.bfloat16), bias

        c, h, w = image_chw
        flat_img = c * h * w
        # synthetic backbone params
        self.w_bb, self.b_bb = linear_init(keys[0], keys[1], flat_img, input_channels)
        # ImageProjModel params: proj1/proj2/proj3 + LayerNorm
        proj_in = batch * input_channels
        self.w1, self.b1 = linear_init(keys[2], keys[3], proj_in, intermediate_dim)
        self.w2, self.b2 = linear_init(keys[4], keys[5], intermediate_dim, intermediate_dim)
        self.w3, self.b3 = linear_init(keys[6], keys[7], intermediate_dim, output_dim)
        self.ln_gamma = jnp.ones((1, output_dim), jnp.float32)
        self.ln_beta = jnp.zeros((1, output_dim), jnp.float32)

    def __call__(self, x):
        # x: (batch_size, N_images, C, H, W), f32
        bsz, n_img, c, h, w = x.shape
        assert n_img == self.batch, "Number of images is not same"
        flat_img = c * h * w

        # Pad batch rows to a multiple of 8 -> unmasked sublane stores; padded
        # rows are sliced off at the end (they come out as LayerNorm beta).
        bsz_p = ((bsz + 7) // 8) * 8
        xr = x.reshape(bsz, n_img, flat_img)
        if bsz_p != bsz:
            xr = jnp.pad(xr, ((0, bsz_p - bsz), (0, 0), (0, 0)))

        # Image-major regroup, mirroring torch's cat(split(x, 1, dim=1), 0):
        # row i*bsz_p + b = image i of (padded) batch row b.  This keeps each
        # image's rows an 8-aligned sublane group so the kernel regroups with
        # static slices and feeds ONE stacked backbone matmul.
        x2d = jnp.transpose(xr, (1, 0, 2)).reshape(n_img * bsz_p, flat_img)

        out = _fused_call(x2d, bsz_p, self.w_bb, self.b_bb,
                          self.w1, self.b1, self.w2, self.b2,
                          self.w3, self.b3, self.ln_gamma, self.ln_beta)
        return out[:bsz]                         # (batch_size, output_dim)


# ----------------------------------------------------------------------------
# Demo
# ----------------------------------------------------------------------------
if __name__ == "__main__":
    key = jax.random.PRNGKey(0)
    k_x, k_params = jax.random.split(key)

    batch_size = 2
    n_images = 5          # ImageEncoder default `batch=5`
    c, h, w = 4, 16, 16

    x = jax.random.normal(k_x, (batch_size, n_images, c, h, w), dtype=jnp.float32)

    model = ImageEncoderPallas(batch=n_images, output_dim=128,
                               input_channels=128, image_chw=(c, h, w),
                               intermediate_dim=512, key=k_params)

    out = model(x)
    out = jax.block_until_ready(out)
    assert out.shape == (batch_size, 128)
    assert jnp.all(jnp.isfinite(out))
    print("KERNEL_OK")
</pallas_src>

<mosaic_0001>
module attributes {stable_mosaic.version = 11 : i64} {
  func.func @_fused_kernel(%arg0: memref<40x1024xf32, #tpu.memory_space<vmem>>, %arg1: memref<1024x128xbf16, #tpu.memory_space<vmem>>, %arg2: memref<1x128xf32, #tpu.memory_space<vmem>>, %arg3: memref<640x512xbf16, #tpu.memory_space<any>>, %arg4: memref<1x512xf32, #tpu.memory_space<vmem>>, %arg5: memref<512x512xbf16, #tpu.memory_space<any>>, %arg6: memref<1x512xf32, #tpu.memory_space<vmem>>, %arg7: memref<512x128xbf16, #tpu.memory_space<any>>, %arg8: memref<1x128xf32, #tpu.memory_space<vmem>>, %arg9: memref<1x128xf32, #tpu.memory_space<vmem>>, %arg10: memref<1x128xf32, #tpu.memory_space<vmem>>, %arg11: memref<8x128xf32, #tpu.memory_space<vmem>>, %arg12: memref<640x512xbf16, #tpu.memory_space<vmem>>, %arg13: memref<512x512xbf16, #tpu.memory_space<vmem>>, %arg14: memref<512x128xbf16, #tpu.memory_space<vmem>>, %arg15: memref<3x!tpu.dma_semaphore, #tpu.memory_space<semaphore_mem>>) attributes {dimension_semantics = [], scalar_prefetch = 0 : i64, scratch_operands = 4 : i64, tpu.core_type = #tpu.core_type<tc>} {
    %c0_i32 = arith.constant 0 : i32
    %0 = tpu.memref_slice %arg15[%c0_i32] : memref<3x!tpu.dma_semaphore, #tpu.memory_space<semaphore_mem>> -> memref<1x!tpu.dma_semaphore, #tpu.memory_space<semaphore_mem>>
    %1 = tpu.memref_squeeze %0 : memref<1x!tpu.dma_semaphore, #tpu.memory_space<semaphore_mem>> -> memref<!tpu.dma_semaphore, #tpu.memory_space<semaphore_mem>>
    tpu.enqueue_dma source(%arg3 : memref<640x512xbf16, #tpu.memory_space<any>>) target(%arg12 : memref<640x512xbf16, #tpu.memory_space<vmem>>) target_semaphore(%1 : memref<!tpu.dma_semaphore, #tpu.memory_space<semaphore_mem>>)
    %c1_i32 = arith.constant 1 : i32
    %2 = tpu.memref_slice %arg15[%c1_i32] : memref<3x!tpu.dma_semaphore, #tpu.memory_space<semaphore_mem>> -> memref<1x!tpu.dma_semaphore, #tpu.memory_space<semaphore_mem>>
    %3 = tpu.memref_squeeze %2 : memref<1x!tpu.dma_semaphore, #tpu.memory_space<semaphore_mem>> -> memref<!tpu.dma_semaphore, #tpu.memory_space<semaphore_mem>>
    tpu.enqueue_dma source(%arg5 : memref<512x512xbf16, #tpu.memory_space<any>>) target(%arg13 : memref<512x512xbf16, #tpu.memory_space<vmem>>) target_semaphore(%3 : memref<!tpu.dma_semaphore, #tpu.memory_space<semaphore_mem>>)
    %c2_i32 = arith.constant 2 : i32
    %4 = tpu.memref_slice %arg15[%c2_i32] : memref<3x!tpu.dma_semaphore, #tpu.memory_space<semaphore_mem>> -> memref<1x!tpu.dma_semaphore, #tpu.memory_space<semaphore_mem>>
    %5 = tpu.memref_squeeze %4 : memref<1x!tpu.dma_semaphore, #tpu.memory_space<semaphore_mem>> -> memref<!tpu.dma_semaphore, #tpu.memory_space<semaphore_mem>>
    tpu.enqueue_dma source(%arg7 : memref<512x128xbf16, #tpu.memory_space<any>>) target(%arg14 : memref<512x128xbf16, #tpu.memory_space<vmem>>) target_semaphore(%5 : memref<!tpu.dma_semaphore, #tpu.memory_space<semaphore_mem>>)
    %c0 = arith.constant 0 : index
    %c0_0 = arith.constant 0 : index
    %6 = vector.load %arg0[%c0, %c0_0] : memref<40x1024xf32, #tpu.memory_space<vmem>>, vector<40x1024xf32>
    %7 = arith.truncf %6 : vector<40x1024xf32> to vector<40x1024xbf16>
    %c0_1 = arith.constant 0 : index
    %c0_2 = arith.constant 0 : index
    %8 = vector.load %arg1[%c0_1, %c0_2] : memref<1024x128xbf16, #tpu.memory_space<vmem>>, vector<1024x128xbf16>
    %cst = arith.constant dense<0.000000e+00> : vector<40x128xf32>
    %9 = tpu.matmul %7, %8, %cst {dimension_numbers = #tpu.dot_dimension_numbers<[1], [0], [0], [1], [0, 0, 1, 1], [], []>} : vector<40x1024xbf16>, vector<1024x128xbf16>, vector<40x128xf32> -> vector<40x128xf32>
    %c0_3 = arith.constant 0 : index
    %c0_4 = arith.constant 0 : index
    %10 = vector.load %arg2[%c0_3, %c0_4] : memref<1x128xf32, #tpu.memory_space<vmem>>, vector<1x128xf32>
    %11 = vector.broadcast %10 : vector<1x128xf32> to vector<40x128xf32>
    %12 = arith.addf %9, %11 : vector<40x128xf32>
    %cst_5 = arith.constant 0.000000e+00 : f32
    %13 = vector.broadcast %cst_5 : f32 to vector<40x128xf32>
    %14 = arith.maximumf %12, %13 : vector<40x128xf32>
    %15 = vector.extract_strided_slice %14 {offsets = [0, 0], sizes = [8, 128], strides = [1, 1]} : vector<40x128xf32> to vector<8x128xf32>
    %16 = vector.extract_strided_slice %14 {offsets = [8, 0], sizes = [8, 128], strides = [1, 1]} : vector<40x128xf32> to vector<8x128xf32>
    %17 = vector.extract_strided_slice %14 {offsets = [16, 0], sizes = [8, 128], strides = [1, 1]} : vector<40x128xf32> to vector<8x128xf32>
    %18 = vector.extract_strided_slice %14 {offsets = [24, 0], sizes = [8, 128], strides = [1, 1]} : vector<40x128xf32> to vector<8x128xf32>
    %19 = vector.extract_strided_slice %14 {offsets = [32, 0], sizes = [8, 128], strides = [1, 1]} : vector<40x128xf32> to vector<8x128xf32>
    %20 = tpu.concatenate %15, %16, %17, %18, %19 in 1 : vector<8x128xf32>, vector<8x128xf32>, vector<8x128xf32>, vector<8x128xf32>, vector<8x128xf32> -> vector<8x640xf32>
    %c0_i32_6 = arith.constant 0 : i32
    %21 = tpu.memref_slice %arg15[%c0_i32_6] : memref<3x!tpu.dma_semaphore, #tpu.memory_space<semaphore_mem>> -> memref<1x!tpu.dma_semaphore, #tpu.memory_space<semaphore_mem>>
    %22 = tpu.memref_squeeze %21 : memref<1x!tpu.dma_semaphore, #tpu.memory_space<semaphore_mem>> -> memref<!tpu.dma_semaphore, #tpu.memory_space<semaphore_mem>>
    tpu.wait_dma2 semaphore(%22 : memref<!tpu.dma_semaphore, #tpu.memory_space<semaphore_mem>>) src(%arg3 : memref<640x512xbf16, #tpu.memory_space<any>>) dst(%arg12 : memref<640x512xbf16, #tpu.memory_space<vmem>>)
    %23 = arith.truncf %20 : vector<8x640xf32> to vector<8x640xbf16>
    %c0_7 = arith.constant 0 : index
    %c0_8 = arith.constant 0 : index
    %24 = vector.load %arg12[%c0_7, %c0_8] : memref<640x512xbf16, #tpu.memory_space<vmem>>, vector<640x512xbf16>
    %cst_9 = arith.constant dense<0.000000e+00> : vector<8x512xf32>
    %25 = tpu.matmul %23, %24, %cst_9 {dimension_numbers = #tpu.dot_dimension_numbers<[1], [0], [0], [1], [0, 0, 1, 1], [], []>} : vector<8x640xbf16>, vector<640x512xbf16>, vector<8x512xf32> -> vector<8x512xf32>
    %c0_10 = arith.constant 0 : index
    %c0_11 = arith.constant 0 : index
    %26 = vector.load %arg4[%c0_10, %c0_11] : memref<1x512xf32, #tpu.memory_space<vmem>>, vector<1x512xf32>
    %27 = vector.broadcast %26 : vector<1x512xf32> to vector<8x512xf32>
    %28 = arith.addf %25, %27 : vector<8x512xf32>
    %cst_12 = arith.constant 0.000000e+00 : f32
    %29 = vector.broadcast %cst_12 : f32 to vector<8x512xf32>
    %30 = arith.maximumf %28, %29 : vector<8x512xf32>
    %c1_i32_13 = arith.constant 1 : i32
    %31 = tpu.memref_slice %arg15[%c1_i32_13] : memref<3x!tpu.dma_semaphore, #tpu.memory_space<semaphore_mem>> -> memref<1x!tpu.dma_semaphore, #tpu.memory_space<semaphore_mem>>
    %32 = tpu.memref_squeeze %31 : memref<1x!tpu.dma_semaphore, #tpu.memory_space<semaphore_mem>> -> memref<!tpu.dma_semaphore, #tpu.memory_space<semaphore_mem>>
    tpu.wait_dma2 semaphore(%32 : memref<!tpu.dma_semaphore, #tpu.memory_space<semaphore_mem>>) src(%arg5 : memref<512x512xbf16, #tpu.memory_space<any>>) dst(%arg13 : memref<512x512xbf16, #tpu.memory_space<vmem>>)
    %33 = arith.truncf %30 : vector<8x512xf32> to vector<8x512xbf16>
    %c0_14 = arith.constant 0 : index
    %c0_15 = arith.constant 0 : index
    %34 = vector.load %arg13[%c0_14, %c0_15] : memref<512x512xbf16, #tpu.memory_space<vmem>>, vector<512x512xbf16>
    %cst_16 = arith.constant dense<0.000000e+00> : vector<8x512xf32>
    %35 = tpu.matmul %33, %34, %cst_16 {dimension_numbers = #tpu.dot_dimension_numbers<[1], [0], [0], [1], [0, 0, 1, 1], [], []>} : vector<8x512xbf16>, vector<512x512xbf16>, vector<8x512xf32> -> vector<8x512xf32>
    %c0_17 = arith.constant 0 : index
    %c0_18 = arith.constant 0 : index
    %36 = vector.load %arg6[%c0_17, %c0_18] : memref<1x512xf32, #tpu.memory_space<vmem>>, vector<1x512xf32>
    %37 = vector.broadcast %36 : vector<1x512xf32> to vector<8x512xf32>
    %38 = arith.addf %35, %37 : vector<8x512xf32>
    %cst_19 = arith.constant 0.000000e+00 : f32
    %39 = vector.broadcast %cst_19 : f32 to vector<8x512xf32>
    %40 = arith.maximumf %38, %39 : vector<8x512xf32>
    %c2_i32_20 = arith.constant 2 : i32
    %41 = tpu.memref_slice %arg15[%c2_i32_20] : memref<3x!tpu.dma_semaphore, #tpu.memory_space<semaphore_mem>> -> memref<1x!tpu.dma_semaphore, #tpu.memory_space<semaphore_mem>>
    %42 = tpu.memref_squeeze %41 : memref<1x!tpu.dma_semaphore, #tpu.memory_space<semaphore_mem>> -> memref<!tpu.dma_semaphore, #tpu.memory_space<semaphore_mem>>
    tpu.wait_dma2 semaphore(%42 : memref<!tpu.dma_semaphore, #tpu.memory_space<semaphore_mem>>) src(%arg7 : memref<512x128xbf16, #tpu.memory_space<any>>) dst(%arg14 : memref<512x128xbf16, #tpu.memory_space<vmem>>)
    %43 = arith.truncf %40 : vector<8x512xf32> to vector<8x512xbf16>
    %c0_21 = arith.constant 0 : index
    %c0_22 = arith.constant 0 : index
    %44 = vector.load %arg14[%c0_21, %c0_22] : memref<512x128xbf16, #tpu.memory_space<vmem>>, vector<512x128xbf16>
    %cst_23 = arith.constant dense<0.000000e+00> : vector<8x128xf32>
    %45 = tpu.matmul %43, %44, %cst_23 {dimension_numbers = #tpu.dot_dimension_numbers<[1], [0], [0], [1], [0, 0, 1, 1], [], []>} : vector<8x512xbf16>, vector<512x128xbf16>, vector<8x128xf32> -> vector<8x128xf32>
    %c0_24 = arith.constant 0 : index
    %c0_25 = arith.constant 0 : index
    %46 = vector.load %arg8[%c0_24, %c0_25] : memref<1x128xf32, #tpu.memory_space<vmem>>, vector<1x128xf32>
    %47 = vector.broadcast %46 : vector<1x128xf32> to vector<8x128xf32>
    %48 = arith.addf %45, %47 : vector<8x128xf32>
    %cst_26 = arith.constant dense<0.000000e+00> : vector<8xf32>
    %49 = vector.multi_reduction <add>, %48, %cst_26 [1] : vector<8x128xf32> to vector<8xf32>
    %50 = vector.shape_cast %49 : vector<8xf32> to vector<8x1xf32>
    %cst_27 = arith.constant 1.280000e+02 : f32
    %51 = vector.broadcast %cst_27 : f32 to vector<8x1xf32>
    %52 = arith.divf %50, %51 : vector<8x1xf32>
    %53 = vector.broadcast %52 : vector<8x1xf32> to vector<8x128xf32>
    %54 = arith.subf %48, %53 : vector<8x128xf32>
    %55 = arith.mulf %54, %54 : vector<8x128xf32>
    %cst_28 = arith.constant dense<0.000000e+00> : vector<8xf32>
    %56 = vector.multi_reduction <add>, %55, %cst_28 [1] : vector<8x128xf32> to vector<8xf32>
    %57 = vector.shape_cast %56 : vector<8xf32> to vector<8x1xf32>
    %cst_29 = arith.constant 1.280000e+02 : f32
    %58 = vector.broadcast %cst_29 : f32 to vector<8x1xf32>
    %59 = arith.divf %57, %58 : vector<8x1xf32>
    %60 = vector.broadcast %52 : vector<8x1xf32> to vector<8x128xf32>
    %61 = arith.subf %48, %60 : vector<8x128xf32>
    %cst_30 = arith.constant 9.99999974E-6 : f32
    %62 = vector.broadcast %cst_30 : f32 to vector<8x1xf32>
    %63 = arith.addf %59, %62 : vector<8x1xf32>
    %64 = math.rsqrt %63 : vector<8x1xf32>
    %65 = vector.broadcast %64 : vector<8x1xf32> to vector<8x128xf32>
    %66 = arith.mulf %61, %65 : vector<8x128xf32>
    %c0_31 = arith.constant 0 : index
    %c0_32 = arith.constant 0 : index
    %67 = vector.load %arg9[%c0_31, %c0_32] : memref<1x128xf32, #tpu.memory_space<vmem>>, vector<1x128xf32>
    %68 = vector.broadcast %67 : vector<1x128xf32> to vector<8x128xf32>
    %69 = arith.mulf %66, %68 : vector<8x128xf32>
    %c0_33 = arith.constant 0 : index
    %c0_34 = arith.constant 0 : index
    %70 = vector.load %arg10[%c0_33, %c0_34] : memref<1x128xf32, #tpu.memory_space<vmem>>, vector<1x128xf32>
    %71 = vector.broadcast %70 : vector<1x128xf32> to vector<8x128xf32>
    %72 = arith.addf %69, %71 : vector<8x128xf32>
    %c0_35 = arith.constant 0 : index
    %c0_36 = arith.constant 0 : index
    %73 = vector.load %arg11[%c0_35, %c0_36] : memref<8x128xf32, #tpu.memory_space<vmem>>, vector<8x128xf32>
    tpu.vector_store %arg11[%c0_35, %c0_36], %72 {strides = array<i32>} : memref<8x128xf32, #tpu.memory_space<vmem>>, vector<8x128xf32>,
    return
  }
}

</mosaic_0001>

<llo_original>
// kernel: tpu_custom_call.1
$region0: #{tpu_custom_call.1}
  #allocation0 [shape = 'u32[]', space=smem, size = 0x4, offset = 0x4, fixed_abs, tag = 'smem constant byte address 0x4 - core index']
  #allocation1 [shape = 'u32[72,128]{1,0:T(1,128)}', space=vmem, size = 0x9000, scoped, tag = 'internal scratch']
  #allocation2 [shape = 'bf16[640,512]{1,0:T(8,128)(2,1)}', space=vmem, size = 0xa0000, scoped, tag = 'scratch operand']
  #allocation3 [shape = 'bf16[512,512]{1,0:T(8,128)(2,1)}', space=vmem, size = 0x80000, scoped, tag = 'scratch operand']
  #allocation4 [shape = 'bf16[512,128]{1,0:T(8,128)(2,1)}', space=vmem, size = 0x20000, scoped, tag = 'scratch operand']
  #allocation5 [shape = 's32[3]{0}', space=sflag, size = 0xc, scoped, tag = 'scratch operand']
  #allocation13 [shape = 's32[]', space=sflag, size = 0x4, offset = 0, fixed_abs, tag = 'sflag constant byte address 0x0 - dummy sync flag']
  #allocation14 [shape = 's32[]', space=sflag, size = 0x4, offset = 0, fixed_abs, tag = 'sflag constant byte address 0x0 - dummy sync flag']
  #allocation15 [shape = 'u32[]', space=smem, size = 0x4, offset = 0x44, fixed_abs, tag = 'smem constant byte address 0x44 - assertion arg 0']
  #allocation16 [shape = 'u32[]', space=smem, size = 0x4, offset = 0x48, fixed_abs, tag = 'smem constant byte address 0x48 - assertion arg 1']
  #allocation17 [shape = 's32[]', space=sflag, size = 0x4, offset = 0, fixed_abs, tag = 'sflag constant byte address 0x0 - dummy sync flag']
  #allocation18 [shape = 's32[]', space=sflag, size = 0x4, offset = 0, fixed_abs, tag = 'sflag constant byte address 0x0 - dummy sync flag']
  #allocation19 [shape = 's32[]', space=sflag, size = 0x4, offset = 0, fixed_abs, tag = 'sflag constant byte address 0x0 - dummy sync flag']
  #allocation20 [shape = 's32[]', space=sflag, size = 0x4, offset = 0, fixed_abs, tag = 'sflag constant byte address 0x0 - dummy sync flag']
  %s0 = inlined_call_operand.hbm [shape: f32[40,1024], index: 0, kind: input, shape index: {}]
  %s1 = inlined_call_operand.hbm [shape: bf16[1024,128], index: 1, kind: input, shape index: {}]
  %s2 = inlined_call_operand.vmem [shape: f32[1,128], index: 2, kind: input, shape index: {}]
  %s3 = inlined_call_operand.hbm [shape: bf16[640,512], index: 3, kind: input, shape index: {}]
  %s4 = inlined_call_operand.hbm [shape: f32[1,512], index: 4, kind: input, shape index: {}]
  %s5 = inlined_call_operand.hbm [shape: bf16[512,512], index: 5, kind: input, shape index: {}]
  %s6 = inlined_call_operand.vmem [shape: f32[1,512], index: 6, kind: input, shape index: {}]
  %s7 = inlined_call_operand.hbm [shape: bf16[512,128], index: 7, kind: input, shape index: {}]
  %s8 = inlined_call_operand.vmem [shape: f32[1,128], index: 8, kind: input, shape index: {}]
  %s9 = inlined_call_operand.vmem [shape: f32[1,128], index: 9, kind: input, shape index: {}]
  %s10 = inlined_call_operand.vmem [shape: f32[1,128], index: 10, kind: input, shape index: {}]
  %s11 = inlined_call_operand.hbm [shape: f32[8,128], index: 11, kind: output, shape index: {}]
  %s12 = sld [smem:[#allocation0]]
  $region66: #{tpu_custom_call.1} parent=0
    _
  %s14 = ssub.s32 1, %s12
  %s15 = scalar_select 0, %s14, %s12
  $region1: #{tpu_custom_call.1} parent=0
    #allocation6 [shape = 'u8[163840]{0}', space=vmem, size = 0x28000, scoped, tag = 'input window, operand 0, single buffered']
    #allocation7 [shape = 's32[1]{0}', space=sflag, size = 0x4, scoped, tag = 'scoped memory for tpu_custom_call.1']
    #allocation8 [shape = 's32[1]{0}', space=sflag, size = 0x4, scoped, tag = 'scoped memory for tpu_custom_call.1']
    #allocation9 [shape = 'u8[262144]{0}', space=vmem, size = 0x40000, scoped, tag = 'input window, operand 1, single buffered']
    #allocation10 [shape = 's32[1]{0}', space=sflag, size = 0x4, scoped, tag = 'scoped memory for tpu_custom_call.1']
    #allocation11 [shape = 'u8[2048]{0}', space=vmem, size = 0x800, scoped, tag = 'input window, operand 4, single buffered']
    #allocation12 [shape = 'u8[4096]{0}', space=vmem, size = 0x1000, scoped, tag = 'output window, operand 0, single buffered']
    %16 = vsyncpa [#allocation7], 0
    %17 = vsyncpa [#allocation10], 0
    %18 = vsyncpa [#allocation8], 0
    // Predicated region
    $region2: #{tpu_custom_call.1} parent=1 // pred_check
      _
    $region3: #{tpu_custom_call.1} parent=1 // pred_check_branch
      %20 = sbr.rel (0) target = $region5
    $region4: #{tpu_custom_call.1} parent=1 // pred_region
      %22 = vsyncadd [#allocation7], 0
      %s23 = sshll.u32 %s0, 4
      %s24 = int_to_ptr.hbm [resolvable:$true] %s23
      %s25 = sshll.u32 [#allocation6], 4
      %s26 = int_to_ptr.vmem [resolvable:$true] %s25
      %31 = dma.hbm_to_vmem [thread:$0]  %s24, 5120, %s26, [#allocation7], 1024, 1024, 64
    $region5: #{tpu_custom_call.1} parent=1 // pred_fallthru
      _
    // Predicated region
    $region6: #{tpu_custom_call.1} parent=1 // pred_check
      _
    $region7: #{tpu_custom_call.1} parent=1 // pred_check_branch
      %33 = sbr.rel (0) target = $region9
    $region8: #{tpu_custom_call.1} parent=1 // pred_region
      %35 = vsyncadd [#allocation10], 0
      %s36 = sshll.u32 %s1, 4
      %s37 = int_to_ptr.hbm [resolvable:$true] %s36
      %s38 = sshll.u32 [#allocation9], 4
      %s39 = int_to_ptr.vmem [resolvable:$true] %s38
      %44 = dma.hbm_to_vmem [thread:$0]  %s37, 8192, %s39, [#allocation10], 64, 64, 4
    $region9: #{tpu_custom_call.1} parent=1 // pred_fallthru
      _
    // Predicated region
    $region10: #{tpu_custom_call.1} parent=1 // pred_check
      _
    $region11: #{tpu_custom_call.1} parent=1 // pred_check_branch
      %46 = sbr.rel (0) target = $region13
    $region12: #{tpu_custom_call.1} parent=1 // pred_region
      _
    $region13: #{tpu_custom_call.1} parent=1 // pred_fallthru
      _
    // Predicated region
    $region14: #{tpu_custom_call.1} parent=1 // pred_check
      _
    $region15: #{tpu_custom_call.1} parent=1 // pred_check_branch
      %48 = sbr.rel (0) target = $region17
    $region16: #{tpu_custom_call.1} parent=1 // pred_region
      %50 = vsyncadd [#allocation10], 0
      %s52 = sshll.u32 %s4, 4
      %s53 = int_to_ptr.hbm [resolvable:$true] %s52
      %s54 = sshll.u32 [#allocation11], 4
      %s55 = int_to_ptr.vmem [resolvable:$true] %s54
      %57 = dma.hbm_to_vmem [thread:$0]  %s53, 64, %s55, [#allocation10]
    $region17: #{tpu_custom_call.1} parent=1 // pred_fallthru
      _
    // Predicated region
    $region18: #{tpu_custom_call.1} parent=1 // pred_check
      _
    $region19: #{tpu_custom_call.1} parent=1 // pred_check_branch
      %59 = sbr.rel (0) target = $region21
    $region20: #{tpu_custom_call.1} parent=1 // pred_region
      _
    $region21: #{tpu_custom_call.1} parent=1 // pred_fallthru
      _
    // Predicated region
    $region22: #{tpu_custom_call.1} parent=1 // pred_check
      _
    $region23: #{tpu_custom_call.1} parent=1 // pred_check_branch
      %61 = sbr.rel (0) target = $region25
    $region24: #{tpu_custom_call.1} parent=1 // pred_region
      _
    $region25: #{tpu_custom_call.1} parent=1 // pred_fallthru
      _
    // Predicated region
    $region26: #{tpu_custom_call.1} parent=1 // pred_check
      _
    $region27: #{tpu_custom_call.1} parent=1 // pred_check_branch
      %63 = sbr.rel (0) target = $region29
    $region28: #{tpu_custom_call.1} parent=1 // pred_region
      _
    $region29: #{tpu_custom_call.1} parent=1 // pred_fallthru
      _
    // Predicated region
    $region30: #{tpu_custom_call.1} parent=1 // pred_check
      _
    $region31: #{tpu_custom_call.1} parent=1 // pred_check_branch
      %65 = sbr.rel (0) target = $region33
    $region32: #{tpu_custom_call.1} parent=1 // pred_region
      _
    $region33: #{tpu_custom_call.1} parent=1 // pred_fallthru
      _
    // Predicated region
    $region34: #{tpu_custom_call.1} parent=1 // pred_check
      _
    $region35: #{tpu_custom_call.1} parent=1 // pred_check_branch
      %67 = sbr.rel (0) target = $region37
    $region36: #{tpu_custom_call.1} parent=1 // pred_region
      %69 = dma.done [#allocation7], 5120
    $region37: #{tpu_custom_call.1} parent=1 // pred_fallthru
      _
    // Predicated region
    $region38: #{tpu_custom_call.1} parent=1 // pred_check
      _
    $region39: #{tpu_custom_call.1} parent=1 // pred_check_branch
      %71 = sbr.rel (0) target = $region41
    $region40: #{tpu_custom_call.1} parent=1 // pred_region
      %73 = dma.done [#allocation10], 8192
    $region41: #{tpu_custom_call.1} parent=1 // pred_fallthru
      _
    // Predicated region
    $region42: #{tpu_custom_call.1} parent=1 // pred_check
      _
    $region43: #{tpu_custom_call.1} parent=1 // pred_check_branch
      %75 = sbr.rel (0) target = $region45
    $region44: #{tpu_custom_call.1} parent=1 // pred_region
      %77 = dma.done [#allocation10], 64
    $region45: #{tpu_custom_call.1} parent=1 // pred_fallthru
      _
    // Predicated region
    $region46: #{tpu_custom_call.1} parent=1 // pred_check
      _
    $region47: #{tpu_custom_call.1} parent=1 // pred_check_branch
      %79 = sbr.rel target = $region49
    $region48: #{tpu_custom_call.1} parent=1 // pred_region
      %80 = sst [smem:[#allocation15]] [#allocation14]
      %81 = sst [smem:[#allocation16]] [#allocation13]
    $region49: #{tpu_custom_call.1} parent=1 // pred_fallthru
      _
    %83 = shalt.err (0)
    %s85 = sshll.u32 %s3, 4
    %s86 = int_to_ptr.hbm [resolvable:$true] %s85
    %s87 = sshll.u32 [#allocation2], 4
    %s88 = int_to_ptr.vmem [resolvable:$true] %s87
    %90 = dma.hbm_to_vmem [thread:$0]  %s86, 20480, %s88, [#allocation5]
    %s91 = scalar_lea.sflag [#allocation5], 1
    // Predicated region
    $region50: #{tpu_custom_call.1} parent=1 // pred_check
      _
    $region51: #{tpu_custom_call.1} parent=1 // pred_check_branch
      %93 = sbr.rel target = $region53
    $region52: #{tpu_custom_call.1} parent=1 // pred_region
      %94 = sst [smem:[#allocation15]] [#allocation18]
      %95 = sst [smem:[#allocation16]] [#allocation17]
    $region53: #{tpu_custom_call.1} parent=1 // pred_fallthru
      _
    %97 = shalt.err (0)
    %s99 = sshll.u32 %s5, 4
    %s100 = int_to_ptr.hbm [resolvable:$true] %s99
    %s101 = sshll.u32 [#allocation3], 4
    %s102 = int_to_ptr.vmem [resolvable:$true] %s101
    %104 = dma.hbm_to_vmem [thread:$0]  %s100, 16384, %s102, %s91
    %s105 = scalar_lea.sflag [#allocation5], 2
    // Predicated region
    $region54: #{tpu_custom_call.1} parent=1 // pred_check
      _
    $region55: #{tpu_custom_call.1} parent=1 // pred_check_branch
      %107 = sbr.rel target = $region57
    $region56: #{tpu_custom_call.1} parent=1 // pred_region
      %108 = sst [smem:[#allocation15]] [#allocation20]
      %109 = sst [smem:[#allocation16]] [#allocation19]
    $region57: #{tpu_custom_call.1} parent=1 // pred_fallthru
      _
    %111 = shalt.err (0)
    %s113 = sshll.u32 %s7, 4
    %s114 = int_to_ptr.hbm [resolvable:$true] %s113
    %s115 = sshll.u32 [#allocation4], 4
    %s116 = int_to_ptr.vmem [resolvable:$true] %s115
    %118 = dma.hbm_to_vmem [thread:$0]  %s114, 4096, %s116, %s105
    %v119 = vld [vmem:[#allocation6] sm:$0xff]
    %v120 = vld [vmem:[#allocation6 + $0x8] sm:$0xff]
    %v121 = vld [vmem:[#allocation6 + $0x10] sm:$0xff]
    %v122 = vld [vmem:[#allocation6 + $0x18] sm:$0xff]
    %v123 = vld [vmem:[#allocation6 + $0x20] sm:$0xff]
    %v124 = vld [vmem:[#allocation6 + $0x28] sm:$0xff]
    %v125 = vld [vmem:[#allocation6 + $0x30] sm:$0xff]
    %v126 = vld [vmem:[#allocation6 + $0x38] sm:$0xff]
    %v127 = vld [vmem:[#allocation6 + $0x40] sm:$0xff]
    %v128 = vld [vmem:[#allocation6 + $0x48] sm:$0xff]
    %v129 = vld [vmem:[#allocation6 + $0x50] sm:$0xff]
    %v130 = vld [vmem:[#allocation6 + $0x58] sm:$0xff]
    %v131 = vld [vmem:[#allocation6 + $0x60] sm:$0xff]
    %v132 = vld [vmem:[#allocation6 + $0x68] sm:$0xff]
    %v133 = vld [vmem:[#allocation6 + $0x70] sm:$0xff]
    %v134 = vld [vmem:[#allocation6 + $0x78] sm:$0xff]
    %v135 = vld [vmem:[#allocation6 + $0x80] sm:$0xff]
    %v136 = vld [vmem:[#allocation6 + $0x88] sm:$0xff]
    %v137 = vld [vmem:[#allocation6 + $0x90] sm:$0xff]
    %v138 = vld [vmem:[#allocation6 + $0x98] sm:$0xff]
    %v139 = vld [vmem:[#allocation6 + $0xa0] sm:$0xff]
    %v140 = vld [vmem:[#allocation6 + $0xa8] sm:$0xff]
    %v141 = vld [vmem:[#allocation6 + $0xb0] sm:$0xff]
    %v142 = vld [vmem:[#allocation6 + $0xb8] sm:$0xff]
    %v143 = vld [vmem:[#allocation6 + $0xc0] sm:$0xff]
    %v144 = vld [vmem:[#allocation6 + $0xc8] sm:$0xff]
    %v145 = vld [vmem:[#allocation6 + $0xd0] sm:$0xff]
    %v146 = vld [vmem:[#allocation6 + $0xd8] sm:$0xff]
    %v147 = vld [vmem:[#allocation6 + $0xe0] sm:$0xff]
    %v148 = vld [vmem:[#allocation6 + $0xe8] sm:$0xff]
    %v149 = vld [vmem:[#allocation6 + $0xf0] sm:$0xff]
    %v150 = vld [vmem:[#allocation6 + $0xf8] sm:$0xff]
    %v151 = vld [vmem:[#allocation6 + $0x100] sm:$0xff]
    %v152 = vld [vmem:[#allocation6 + $0x108] sm:$0xff]
    %v153 = vld [vmem:[#allocation6 + $0x110] sm:$0xff]
    %v154 = vld [vmem:[#allocation6 + $0x118] sm:$0xff]
    %v155 = vld [vmem:[#allocation6 + $0x120] sm:$0xff]
    %v156 = vld [vmem:[#allocation6 + $0x128] sm:$0xff]
    %v157 = vld [vmem:[#allocation6 + $0x130] sm:$0xff]
    %v158 = vld [vmem:[#allocation6 + $0x138] sm:$0xff]
    %v159 = vpack.c.bf16 %v127, %v119
    %v160 = vpack.c.bf16 %v128, %v120
    %v161 = vpack.c.bf16 %v129, %v121
    %v162 = vpack.c.bf16 %v130, %v122
    %v163 = vpack.c.bf16 %v131, %v123
    %v164 = vpack.c.bf16 %v132, %v124
    %v165 = vpack.c.bf16 %v133, %v125
    %v166 = vpack.c.bf16 %v134, %v126
    %v167 = vpack.c.bf16 %v143, %v135
    %v168 = vpack.c.bf16 %v144, %v136
    %v169 = vpack.c.bf16 %v145, %v137
    %v170 = vpack.c.bf16 %v146, %v138
    %v171 = vpack.c.bf16 %v147, %v139
    %v172 = vpack.c.bf16 %v148, %v140
    %v173 = vpack.c.bf16 %v149, %v141
    %v174 = vpack.c.bf16 %v150, %v142
    %v175 = vpack.c.bf16 %v151, %v151
    %v176 = vpack.c.bf16 %v152, %v152
    %v177 = vpack.c.bf16 %v153, %v153
    %v178 = vpack.c.bf16 %v154, %v154
    %v179 = vpack.c.bf16 %v155, %v155
    %v180 = vpack.c.bf16 %v156, %v156
    %v181 = vpack.c.bf16 %v157, %v157
    %v182 = vpack.c.bf16 %v158, %v158
    %v183 = vld [vmem:[#allocation9] sm:$0xf]
    %v184 = vld [vmem:[#allocation9 + $0x4] sm:$0xf]
    %v185 = vld [vmem:[#allocation9 + $0x8] sm:$0xf]
    %v186 = vld [vmem:[#allocation9 + $0xc] sm:$0xf]
    %v187 = vld [vmem:[#allocation9 + $0x10] sm:$0xf]
    %v188 = vld [vmem:[#allocation9 + $0x14] sm:$0xf]
    %v189 = vld [vmem:[#allocation9 + $0x18] sm:$0xf]
    %v190 = vld [vmem:[#allocation9 + $0x1c] sm:$0xf]
    %v191 = vld [vmem:[#allocation9 + $0x20] sm:$0xf]
    %v192 = vld [vmem:[#allocation9 + $0x24] sm:$0xf]
    %v193 = vld [vmem:[#allocation9 + $0x28] sm:$0xf]
    %v194 = vld [vmem:[#allocation9 + $0x2c] sm:$0xf]
    %v195 = vld [vmem:[#allocation9 + $0x30] sm:$0xf]
    %v196 = vld [vmem:[#allocation9 + $0x34] sm:$0xf]
    %v197 = vld [vmem:[#allocation9 + $0x38] sm:$0xf]
    %v198 = vld [vmem:[#allocation9 + $0x3c] sm:$0xf]
    %v199 = vld [vmem:[#allocation9 + $0x40] sm:$0xf]
    %v200 = vld [vmem:[#allocation9 + $0x44] sm:$0xf]
    %v201 = vld [vmem:[#allocation9 + $0x48] sm:$0xf]
    %v202 = vld [vmem:[#allocation9 + $0x4c] sm:$0xf]
    %v203 = vld [vmem:[#allocation9 + $0x50] sm:$0xf]
    %v204 = vld [vmem:[#allocation9 + $0x54] sm:$0xf]
    %v205 = vld [vmem:[#allocation9 + $0x58] sm:$0xf]
    %v206 = vld [vmem:[#allocation9 + $0x5c] sm:$0xf]
    %v207 = vld [vmem:[#allocation9 + $0x60] sm:$0xf]
    %v208 = vld [vmem:[#allocation9 + $0x64] sm:$0xf]
    %v209 = vld [vmem:[#allocation9 + $0x68] sm:$0xf]
    %v210 = vld [vmem:[#allocation9 + $0x6c] sm:$0xf]
    %v211 = vld [vmem:[#allocation9 + $0x70] sm:$0xf]
    %v212 = vld [vmem:[#allocation9 + $0x74] sm:$0xf]
    %v213 = vld [vmem:[#allocation9 + $0x78] sm:$0xf]
    %v214 = vld [vmem:[#allocation9 + $0x7c] sm:$0xf]
    %v215 = vld [vmem:[#allocation9 + $0x80] sm:$0xf]
    %v216 = vld [vmem:[#allocation9 + $0x84] sm:$0xf]
    %v217 = vld [vmem:[#allocation9 + $0x88] sm:$0xf]
    %v218 = vld [vmem:[#allocation9 + $0x8c] sm:$0xf]
    %v219 = vld [vmem:[#allocation9 + $0x90] sm:$0xf]
    %v220 = vld [vmem:[#allocation9 + $0x94] sm:$0xf]
    %v221 = vld [vmem:[#allocation9 + $0x98] sm:$0xf]
    %v222 = vld [vmem:[#allocation9 + $0x9c] sm:$0xf]
    %v223 = vld [vmem:[#allocation9 + $0xa0] sm:$0xf]
    %v224 = vld [vmem:[#allocation9 + $0xa4] sm:$0xf]
    %v225 = vld [vmem:[#allocation9 + $0xa8] sm:$0xf]
    %v226 = vld [vmem:[#allocation9 + $0xac] sm:$0xf]
    %v227 = vld [vmem:[#allocation9 + $0xb0] sm:$0xf]
    %v228 = vld [vmem:[#allocation9 + $0xb4] sm:$0xf]
    %v229 = vld [vmem:[#allocation9 + $0xb8] sm:$0xf]
    %v230 = vld [vmem:[#allocation9 + $0xbc] sm:$0xf]
    %v231 = vld [vmem:[#allocation9 + $0xc0] sm:$0xf]
    %v232 = vld [vmem:[#allocation9 + $0xc4] sm:$0xf]
    %v233 = vld [vmem:[#allocation9 + $0xc8] sm:$0xf]
    %v234 = vld [vmem:[#allocation9 + $0xcc] sm:$0xf]
    %v235 = vld [vmem:[#allocation9 + $0xd0] sm:$0xf]
    %v236 = vld [vmem:[#allocation9 + $0xd4] sm:$0xf]
    %v237 = vld [vmem:[#allocation9 + $0xd8] sm:$0xf]
    %v238 = vld [vmem:[#allocation9 + $0xdc] sm:$0xf]
    %v239 = vld [vmem:[#allocation9 + $0xe0] sm:$0xf]
    %v240 = vld [vmem:[#allocation9 + $0xe4] sm:$0xf]
    %v241 = vld [vmem:[#allocation9 + $0xe8] sm:$0xf]
    %v242 = vld [vmem:[#allocation9 + $0xec] sm:$0xf]
    %v243 = vld [vmem:[#allocation9 + $0xf0] sm:$0xf]
    %v244 = vld [vmem:[#allocation9 + $0xf4] sm:$0xf]
    %v245 = vld [vmem:[#allocation9 + $0xf8] sm:$0xf]
    %v246 = vld [vmem:[#allocation9 + $0xfc] sm:$0xf]
    %v247 = vld [vmem:[#allocation9 + $0x100] sm:$0xf]
    %v248 = vld [vmem:[#allocation9 + $0x104] sm:$0xf]
    %v249 = vld [vmem:[#allocation9 + $0x108] sm:$0xf]
    %v250 = vld [vmem:[#allocation9 + $0x10c] sm:$0xf]
    %v251 = vld [vmem:[#allocation9 + $0x110] sm:$0xf]
    %v252 = vld [vmem:[#allocation9 + $0x114] sm:$0xf]
    %v253 = vld [vmem:[#allocation9 + $0x118] sm:$0xf]
    %v254 = vld [vmem:[#allocation9 + $0x11c] sm:$0xf]
    %v255 = vld [vmem:[#allocation9 + $0x120] sm:$0xf]
    %v256 = vld [vmem:[#allocation9 + $0x124] sm:$0xf]
    %v257 = vld [vmem:[#allocation9 + $0x128] sm:$0xf]
    %v258 = vld [vmem:[#allocation9 + $0x12c] sm:$0xf]
    %v259 = vld [vmem:[#allocation9 + $0x130] sm:$0xf]
    %v260 = vld [vmem:[#allocation9 + $0x134] sm:$0xf]
    %v261 = vld [vmem:[#allocation9 + $0x138] sm:$0xf]
    %v262 = vld [vmem:[#allocation9 + $0x13c] sm:$0xf]
    %v263 = vld [vmem:[#allocation9 + $0x140] sm:$0xf]
    %v264 = vld [vmem:[#allocation9 + $0x144] sm:$0xf]
    %v265 = vld [vmem:[#allocation9 + $0x148] sm:$0xf]
    %v266 = vld [vmem:[#allocation9 + $0x14c] sm:$0xf]
    %v267 = vld [vmem:[#allocation9 + $0x150] sm:$0xf]
    %v268 = vld [vmem:[#allocation9 + $0x154] sm:$0xf]
    %v269 = vld [vmem:[#allocation9 + $0x158] sm:$0xf]
    %v270 = vld [vmem:[#allocation9 + $0x15c] sm:$0xf]
    %v271 = vld [vmem:[#allocation9 + $0x160] sm:$0xf]
    %v272 = vld [vmem:[#allocation9 + $0x164] sm:$0xf]
    %v273 = vld [vmem:[#allocation9 + $0x168] sm:$0xf]
    %v274 = vld [vmem:[#allocation9 + $0x16c] sm:$0xf]
    %v275 = vld [vmem:[#allocation9 + $0x170] sm:$0xf]
    %v276 = vld [vmem:[#allocation9 + $0x174] sm:$0xf]
    %v277 = vld [vmem:[#allocation9 + $0x178] sm:$0xf]
    %v278 = vld [vmem:[#allocation9 + $0x17c] sm:$0xf]
    %v279 = vld [vmem:[#allocation9 + $0x180] sm:$0xf]
    %v280 = vld [vmem:[#allocation9 + $0x184] sm:$0xf]
    %v281 = vld [vmem:[#allocation9 + $0x188] sm:$0xf]
    %v282 = vld [vmem:[#allocation9 + $0x18c] sm:$0xf]
    %v283 = vld [vmem:[#allocation9 + $0x190] sm:$0xf]
    %v284 = vld [vmem:[#allocation9 + $0x194] sm:$0xf]
    %v285 = vld [vmem:[#allocation9 + $0x198] sm:$0xf]
    %v286 = vld [vmem:[#allocation9 + $0x19c] sm:$0xf]
    %v287 = vld [vmem:[#allocation9 + $0x1a0] sm:$0xf]
    %v288 = vld [vmem:[#allocation9 + $0x1a4] sm:$0xf]
    %v289 = vld [vmem:[#allocation9 + $0x1a8] sm:$0xf]
    %v290 = vld [vmem:[#allocation9 + $0x1ac] sm:$0xf]
    %v291 = vld [vmem:[#allocation9 + $0x1b0] sm:$0xf]
    %v292 = vld [vmem:[#allocation9 + $0x1b4] sm:$0xf]
    %v293 = vld [vmem:[#allocation9 + $0x1b8] sm:$0xf]
    %v294 = vld [vmem:[#allocation9 + $0x1bc] sm:$0xf]
    %v295 = vld [vmem:[#allocation9 + $0x1c0] sm:$0xf]
    %v296 = vld [vmem:[#allocation9 + $0x1c4] sm:$0xf]
    %v297 = vld [vmem:[#allocation9 + $0x1c8] sm:$0xf]
    %v298 = vld [vmem:[#allocation9 + $0x1cc] sm:$0xf]
    %v299 = vld [vmem:[#allocation9 + $0x1d0] sm:$0xf]
    %v300 = vld [vmem:[#allocation9 + $0x1d4] sm:$0xf]
    %v301 = vld [vmem:[#allocation9 + $0x1d8] sm:$0xf]
    %v302 = vld [vmem:[#allocation9 + $0x1dc] sm:$0xf]
    %v303 = vld [vmem:[#allocation9 + $0x1e0] sm:$0xf]
    %v304 = vld [vmem:[#allocation9 + $0x1e4] sm:$0xf]
    %v305 = vld [vmem:[#allocation9 + $0x1e8] sm:$0xf]
    %v306 = vld [vmem:[#allocation9 + $0x1ec] sm:$0xf]
    %v307 = vld [vmem:[#allocation9 + $0x1f0] sm:$0xf]
    %v308 = vld [vmem:[#allocation9 + $0x1f4] sm:$0xf]
    %v309 = vld [vmem:[#allocation9 + $0x1f8] sm:$0xf]
    %v310 = vld [vmem:[#allocation9 + $0x1fc] sm:$0xf]
    %v311 = vld [vmem:[%s2] sm:$0x1]
    %v313 = vperm.slane %v311, 0
    %v443 = vunpack.c.l.b16 %v183
    %v444 = vunpack.c.l.b16 %v184
    %v445 = vunpack.c.l.b16 %v185
    %v446 = vunpack.c.l.b16 %v186
    %v447 = vunpack.c.l.b16 %v187
    %v448 = vunpack.c.l.b16 %v188
    %v449 = vunpack.c.l.b16 %v189
    %v450 = vunpack.c.l.b16 %v190
    %v451 = vunpack.c.l.b16 %v191
    %v452 = vunpack.c.l.b16 %v192
    %v453 = vunpack.c.l.b16 %v193
    %v454 = vunpack.c.l.b16 %v194
    %v455 = vunpack.c.l.b16 %v195
    %v456 = vunpack.c.l.b16 %v196
    %v457 = vunpack.c.l.b16 %v197
    %v458 = vunpack.c.l.b16 %v198
    %v459 = vunpack.c.l.b16 %v199
    %v460 = vunpack.c.l.b16 %v200
    %v461 = vunpack.c.l.b16 %v201
    %v462 = vunpack.c.l.b16 %v202
    %v463 = vunpack.c.l.b16 %v203
    %v464 = vunpack.c.l.b16 %v204
    %v465 = vunpack.c.l.b16 %v205
    %v466 = vunpack.c.l.b16 %v206
    %v467 = vunpack.c.l.b16 %v207
    %v468 = vunpack.c.l.b16 %v208
    %v469 = vunpack.c.l.b16 %v209
    %v470 = vunpack.c.l.b16 %v210
    %v471 = vunpack.c.l.b16 %v211
    %v472 = vunpack.c.l.b16 %v212
    %v473 = vunpack.c.l.b16 %v213
    %v474 = vunpack.c.l.b16 %v214
    %v475 = vunpack.c.l.b16 %v215
    %v476 = vunpack.c.l.b16 %v216
    %v477 = vunpack.c.l.b16 %v217
    %v478 = vunpack.c.l.b16 %v218
    %v479 = vunpack.c.l.b16 %v219
    %v480 = vunpack.c.l.b16 %v220
    %v481 = vunpack.c.l.b16 %v221
    %v482 = vunpack.c.l.b16 %v222
    %v483 = vunpack.c.l.b16 %v223
    %v484 = vunpack.c.l.b16 %v224
    %v485 = vunpack.c.l.b16 %v225
    %v486 = vunpack.c.l.b16 %v226
    %v487 = vunpack.c.l.b16 %v227
    %v488 = vunpack.c.l.b16 %v228
    %v489 = vunpack.c.l.b16 %v229
    %v490 = vunpack.c.l.b16 %v230
    %v491 = vunpack.c.l.b16 %v231
    %v492 = vunpack.c.l.b16 %v232
    %v493 = vunpack.c.l.b16 %v233
    %v494 = vunpack.c.l.b16 %v234
    %v495 = vunpack.c.l.b16 %v235
    %v496 = vunpack.c.l.b16 %v236
    %v497 = vunpack.c.l.b16 %v237
    %v498 = vunpack.c.l.b16 %v238
    %v499 = vunpack.c.l.b16 %v239
    %v500 = vunpack.c.l.b16 %v240
    %v501 = vunpack.c.l.b16 %v241
    %v502 = vunpack.c.l.b16 %v242
    %v503 = vunpack.c.l.b16 %v243
    %v504 = vunpack.c.l.b16 %v244
    %v505 = vunpack.c.l.b16 %v245
    %v506 = vunpack.c.l.b16 %v246
    %v507 = vunpack.c.l.b16 %v247
    %v508 = vunpack.c.l.b16 %v248
    %v509 = vunpack.c.l.b16 %v249
    %v510 = vunpack.c.l.b16 %v250
    %v511 = vunpack.c.l.b16 %v251
    %v512 = vunpack.c.l.b16 %v252
    %v513 = vunpack.c.l.b16 %v253
    %v514 = vunpack.c.l.b16 %v254
    %v515 = vunpack.c.l.b16 %v255
    %v516 = vunpack.c.l.b16 %v256
    %v517 = vunpack.c.l.b16 %v257
    %v518 = vunpack.c.l.b16 %v258
    %v519 = vunpack.c.l.b16 %v259
    %v520 = vunpack.c.l.b16 %v260
    %v521 = vunpack.c.l.b16 %v261
    %v522 = vunpack.c.l.b16 %v262
    %v523 = vunpack.c.l.b16 %v263
    %v524 = vunpack.c.l.b16 %v264
    %v525 = vunpack.c.l.b16 %v265
    %v526 = vunpack.c.l.b16 %v266
    %v527 = vunpack.c.l.b16 %v267
    %v528 = vunpack.c.l.b16 %v268
    %v529 = vunpack.c.l.b16 %v269
    %v530 = vunpack.c.l.b16 %v270
    %v531 = vunpack.c.l.b16 %v271
    %v532 = vunpack.c.l.b16 %v272
    %v533 = vunpack.c.l.b16 %v273
    %v534 = vunpack.c.l.b16 %v274
    %v535 = vunpack.c.l.b16 %v275
    %v536 = vunpack.c.l.b16 %v276
    %v537 = vunpack.c.l.b16 %v277
    %v538 = vunpack.c.l.b16 %v278
    %v539 = vunpack.c.l.b16 %v279
    %v540 = vunpack.c.l.b16 %v280
    %v541 = vunpack.c.l.b16 %v281
    %v542 = vunpack.c.l.b16 %v282
    %v543 = vunpack.c.l.b16 %v283
    %v544 = vunpack.c.l.b16 %v284
    %v545 = vunpack.c.l.b16 %v285
    %v546 = vunpack.c.l.b16 %v286
    %v547 = vunpack.c.l.b16 %v287
    %v548 = vunpack.c.l.b16 %v288
    %v549 = vunpack.c.l.b16 %v289
    %v550 = vunpack.c.l.b16 %v290
    %v551 = vunpack.c.l.b16 %v291
    %v552 = vunpack.c.l.b16 %v292
    %v553 = vunpack.c.l.b16 %v293
    %v554 = vunpack.c.l.b16 %v294
    %v555 = vunpack.c.l.b16 %v295
    %v556 = vunpack.c.l.b16 %v296
    %v557 = vunpack.c.l.b16 %v297
    %v558 = vunpack.c.l.b16 %v298
    %v559 = vunpack.c.l.b16 %v299
    %v560 = vunpack.c.l.b16 %v300
    %v561 = vunpack.c.l.b16 %v301
    %v562 = vunpack.c.l.b16 %v302
    %v563 = vunpack.c.l.b16 %v303
    %v564 = vunpack.c.l.b16 %v304
    %v565 = vunpack.c.l.b16 %v305
    %v566 = vunpack.c.l.b16 %v306
    %v567 = vunpack.c.l.b16 %v307
    %v568 = vunpack.c.l.b16 %v308
    %v569 = vunpack.c.l.b16 %v309
    %v570 = vunpack.c.l.b16 %v310
    %v571 = vpack.c.b16 %v444, %v443
    %v572 = vpack.c.b16 %v446, %v445
    %v573 = vpack.c.b16 %v448, %v447
    %v574 = vpack.c.b16 %v450, %v449
    %v575 = vpack.c.b16 %v452, %v451
    %v576 = vpack.c.b16 %v454, %v453
    %v577 = vpack.c.b16 %v456, %v455
    %v578 = vpack.c.b16 %v458, %v457
    %v579 = vpack.c.b16 %v460, %v459
    %v580 = vpack.c.b16 %v462, %v461
    %v581 = vpack.c.b16 %v464, %v463
    %v582 = vpack.c.b16 %v466, %v465
    %v583 = vpack.c.b16 %v468, %v467
    %v584 = vpack.c.b16 %v470, %v469
    %v585 = vpack.c.b16 %v472, %v471
    %v586 = vpack.c.b16 %v474, %v473
    %v587 = vpack.c.b16 %v476, %v475
    %v588 = vpack.c.b16 %v478, %v477
    %v589 = vpack.c.b16 %v480, %v479
    %v590 = vpack.c.b16 %v482, %v481
    %v591 = vpack.c.b16 %v484, %v483
    %v592 = vpack.c.b16 %v486, %v485
    %v593 = vpack.c.b16 %v488, %v487
    %v594 = vpack.c.b16 %v490, %v489
    %v595 = vpack.c.b16 %v492, %v491
    %v596 = vpack.c.b16 %v494, %v493
    %v597 = vpack.c.b16 %v496, %v495
    %v598 = vpack.c.b16 %v498, %v497
    %v599 = vpack.c.b16 %v500, %v499
    %v600 = vpack.c.b16 %v502, %v501
    %v601 = vpack.c.b16 %v504, %v503
    %v602 = vpack.c.b16 %v506, %v505
    %v603 = vpack.c.b16 %v508, %v507
    %v604 = vpack.c.b16 %v510, %v509
    %v605 = vpack.c.b16 %v512, %v511
    %v606 = vpack.c.b16 %v514, %v513
    %v607 = vpack.c.b16 %v516, %v515
    %v608 = vpack.c.b16 %v518, %v517
    %v609 = vpack.c.b16 %v520, %v519
    %v610 = vpack.c.b16 %v522, %v521
    %v611 = vpack.c.b16 %v524, %v523
    %v612 = vpack.c.b16 %v526, %v525
    %v613 = vpack.c.b16 %v528, %v527
    %v614 = vpack.c.b16 %v530, %v529
    %v615 = vpack.c.b16 %v532, %v531
    %v616 = vpack.c.b16 %v534, %v533
    %v617 = vpack.c.b16 %v536, %v535
    %v618 = vpack.c.b16 %v538, %v537
    %v619 = vpack.c.b16 %v540, %v539
    %v620 = vpack.c.b16 %v542, %v541
    %v621 = vpack.c.b16 %v544, %v543
    %v622 = vpack.c.b16 %v546, %v545
    %v623 = vpack.c.b16 %v548, %v547
    %v624 = vpack.c.b16 %v550, %v549
    %v625 = vpack.c.b16 %v552, %v551
    %v626 = vpack.c.b16 %v554, %v553
    %v627 = vpack.c.b16 %v556, %v555
    %v628 = vpack.c.b16 %v558, %v557
    %v629 = vpack.c.b16 %v560, %v559
    %v630 = vpack.c.b16 %v562, %v561
    %v631 = vpack.c.b16 %v564, %v563
    %v632 = vpack.c.b16 %v566, %v565
    %v633 = vpack.c.b16 %v568, %v567
    %v634 = vpack.c.b16 %v570, %v569
    %699 = vmatpush.bf16.msra.mxu0 %v578
    %700 = vmatpush.bf16.msra.mxu0 %v577
    %701 = vmatpush.bf16.msra.mxu0 %v576
    %702 = vmatpush.bf16.msra.mxu0 %v575
    %703 = vmatpush.bf16.msra.mxu0 %v574
    %704 = vmatpush.bf16.msra.mxu0 %v573
    %705 = vmatpush.bf16.msra.mxu0 %v572
    %706 = vmatpush.bf16.msra.mxu0 %v571
    %707 = vmatmul.bf16.gmra.mxu0 %v159
    %v708 = vpop.f32.mrf.mxu0
    %v709 = vadd.f32 %v313, %v708
    %v710 = vpop.f32.mrf.mxu0
    %v711 = vadd.f32 %v313, %v710
    %712 = vmatmul.bf16.gmra.mxu0 %v167
    %v713 = vpop.f32.mrf.mxu0
    %v714 = vadd.f32 %v313, %v713
    %v715 = vpop.f32.mrf.mxu0
    %v716 = vadd.f32 %v313, %v715
    %717 = vmatmul.bf16.gmra.mxu0 %v175
    %v718 = vpop.f32.mrf.mxu0
    %v719 = vadd.f32 %v313, %v718
    %v720 = vpop.f32.mrf.mxu0
    %721 = vdwg.mxu0
    %722 = vmatpush.bf16.msra.mxu0 %v586
    %723 = vmatpush.bf16.msra.mxu0 %v585
    %724 = vmatpush.bf16.msra.mxu0 %v584
    %725 = vmatpush.bf16.msra.mxu0 %v583
    %726 = vmatpush.bf16.msra.mxu0 %v582
    %727 = vmatpush.bf16.msra.mxu0 %v581
    %728 = vmatpush.bf16.msra.mxu0 %v580
    %729 = vmatpush.bf16.msra.mxu0 %v579
    %730 = vmatmul.bf16.gmra.mxu0 %v160
    %v731 = vpop.f32.mrf.mxu0
    %v732 = vadd.f32 %v709, %v731
    %v733 = vpop.f32.mrf.mxu0
    %v734 = vadd.f32 %v711, %v733
    %735 = vmatmul.bf16.gmra.mxu0 %v168
    %v736 = vpop.f32.mrf.mxu0
    %v737 = vadd.f32 %v714, %v736
    %v738 = vpop.f32.mrf.mxu0
    %v739 = vadd.f32 %v716, %v738
    %740 = vmatmul.bf16.gmra.mxu0 %v176
    %v741 = vpop.f32.mrf.mxu0
    %v742 = vadd.f32 %v719, %v741
    %v743 = vpop.f32.mrf.mxu0
    %744 = vdwg.mxu0
    %745 = vmatpush.bf16.msra.mxu0 %v594
    %746 = vmatpush.bf16.msra.mxu0 %v593
    %747 = vmatpush.bf16.msra.mxu0 %v592
    %748 = vmatpush.bf16.msra.mxu0 %v591
    %749 = vmatpush.bf16.msra.mxu0 %v590
    %750 = vmatpush.bf16.msra.mxu0 %v589
    %751 = vmatpush.bf16.msra.mxu0 %v588
    %752 = vmatpush.bf16.msra.mxu0 %v587
    %753 = vmatmul.bf16.gmra.mxu0 %v161
    %v754 = vpop.f32.mrf.mxu0
    %v755 = vadd.f32 %v732, %v754
    %v756 = vpop.f32.mrf.mxu0
    %v757 = vadd.f32 %v734, %v756
    %758 = vmatmul.bf16.gmra.mxu0 %v169
    %v759 = vpop.f32.mrf.mxu0
    %v760 = vadd.f32 %v737, %v759
    %v761 = vpop.f32.mrf.mxu0
    %v762 = vadd.f32 %v739, %v761
    %763 = vmatmul.bf16.gmra.mxu0 %v177
    %v764 = vpop.f32.mrf.mxu0
    %v765 = vadd.f32 %v742, %v764
    %v766 = vpop.f32.mrf.mxu0
    %767 = vdwg.mxu0
    %768 = vmatpush.bf16.msra.mxu0 %v602
    %769 = vmatpush.bf16.msra.mxu0 %v601
    %770 = vmatpush.bf16.msra.mxu0 %v600
    %771 = vmatpush.bf16.msra.mxu0 %v599
    %772 = vmatpush.bf16.msra.mxu0 %v598
    %773 = vmatpush.bf16.msra.mxu0 %v597
    %774 = vmatpush.bf16.msra.mxu0 %v596
    %775 = vmatpush.bf16.msra.mxu0 %v595
    %776 = vmatmul.bf16.gmra.mxu0 %v162
    %v777 = vpop.f32.mrf.mxu0
    %v778 = vadd.f32 %v755, %v777
    %v779 = vpop.f32.mrf.mxu0
    %v780 = vadd.f32 %v757, %v779
    %781 = vmatmul.bf16.gmra.mxu0 %v170
    %v782 = vpop.f32.mrf.mxu0
    %v783 = vadd.f32 %v760, %v782
    %v784 = vpop.f32.mrf.mxu0
    %v785 = vadd.f32 %v762, %v784
    %786 = vmatmul.bf16.gmra.mxu0 %v178
    %v787 = vpop.f32.mrf.mxu0
    %v788 = vadd.f32 %v765, %v787
    %v789 = vpop.f32.mrf.mxu0
    %790 = vdwg.mxu0
    %791 = vmatpush.bf16.msra.mxu0 %v610
    %792 = vmatpush.bf16.msra.mxu0 %v609
    %793 = vmatpush.bf16.msra.mxu0 %v608
    %794 = vmatpush.bf16.msra.mxu0 %v607
    %795 = vmatpush.bf16.msra.mxu0 %v606
    %796 = vmatpush.bf16.msra.mxu0 %v605
    %797 = vmatpush.bf16.msra.mxu0 %v604
    %798 = vmatpush.bf16.msra.mxu0 %v603
    %799 = vmatmul.bf16.gmra.mxu0 %v163
    %v800 = vpop.f32.mrf.mxu0
    %v801 = vadd.f32 %v778, %v800
    %v802 = vpop.f32.mrf.mxu0
    %v803 = vadd.f32 %v780, %v802
    %804 = vmatmul.bf16.gmra.mxu0 %v171
    %v805 = vpop.f32.mrf.mxu0
    %v806 = vadd.f32 %v783, %v805
    %v807 = vpop.f32.mrf.mxu0
    %v808 = vadd.f32 %v785, %v807
    %809 = vmatmul.bf16.gmra.mxu0 %v179
    %v810 = vpop.f32.mrf.mxu0
    %v811 = vadd.f32 %v788, %v810
    %v812 = vpop.f32.mrf.mxu0
    %813 = vdwg.mxu0
    %814 = vmatpush.bf16.msra.mxu0 %v618
    %815 = vmatpush.bf16.msra.mxu0 %v617
    %816 = vmatpush.bf16.msra.mxu0 %v616
    %817 = vmatpush.bf16.msra.mxu0 %v615
    %818 = vmatpush.bf16.msra.mxu0 %v614
    %819 = vmatpush.bf16.msra.mxu0 %v613
    %820 = vmatpush.bf16.msra.mxu0 %v612
    %821 = vmatpush.bf16.msra.mxu0 %v611
    %822 = vmatmul.bf16.gmra.mxu0 %v164
    %v823 = vpop.f32.mrf.mxu0
    %v824 = vadd.f32 %v801, %v823
    %v825 = vpop.f32.mrf.mxu0
    %v826 = vadd.f32 %v803, %v825
    %827 = vmatmul.bf16.gmra.mxu0 %v172
    %v828 = vpop.f32.mrf.mxu0
    %v829 = vadd.f32 %v806, %v828
    %v830 = vpop.f32.mrf.mxu0
    %v831 = vadd.f32 %v808, %v830
    %832 = vmatmul.bf16.gmra.mxu0 %v180
    %v833 = vpop.f32.mrf.mxu0
    %v834 = vadd.f32 %v811, %v833
    %v835 = vpop.f32.mrf.mxu0
    %836 = vdwg.mxu0
    %837 = vmatpush.bf16.msra.mxu0 %v626
    %838 = vmatpush.bf16.msra.mxu0 %v625
    %839 = vmatpush.bf16.msra.mxu0 %v624
    %840 = vmatpush.bf16.msra.mxu0 %v623
    %841 = vmatpush.bf16.msra.mxu0 %v622
    %842 = vmatpush.bf16.msra.mxu0 %v621
    %843 = vmatpush.bf16.msra.mxu0 %v620
    %844 = vmatpush.bf16.msra.mxu0 %v619
    %845 = vmatmul.bf16.gmra.mxu0 %v165
    %v846 = vpop.f32.mrf.mxu0
    %v847 = vadd.f32 %v824, %v846
    %v848 = vpop.f32.mrf.mxu0
    %v849 = vadd.f32 %v826, %v848
    %850 = vmatmul.bf16.gmra.mxu0 %v173
    %v851 = vpop.f32.mrf.mxu0
    %v852 = vadd.f32 %v829, %v851
    %v853 = vpop.f32.mrf.mxu0
    %v854 = vadd.f32 %v831, %v853
    %855 = vmatmul.bf16.gmra.mxu0 %v181
    %v856 = vpop.f32.mrf.mxu0
    %v857 = vadd.f32 %v834, %v856
    %v858 = vpop.f32.mrf.mxu0
    %859 = vdwg.mxu0
    %860 = vmatpush.bf16.msra.mxu0 %v634
    %861 = vmatpush.bf16.msra.mxu0 %v633
    %862 = vmatpush.bf16.msra.mxu0 %v632
    %863 = vmatpush.bf16.msra.mxu0 %v631
    %864 = vmatpush.bf16.msra.mxu0 %v630
    %865 = vmatpush.bf16.msra.mxu0 %v629
    %866 = vmatpush.bf16.msra.mxu0 %v628
    %867 = vmatpush.bf16.msra.mxu0 %v627
    %868 = vmatmul.bf16.gmra.mxu0 %v166
    %v869 = vpop.f32.mrf.mxu0
    %v870 = vadd.f32 %v847, %v869
    %v871 = vpop.f32.mrf.mxu0
    %v872 = vadd.f32 %v849, %v871
    %873 = vmatmul.bf16.gmra.mxu0 %v174
    %v874 = vpop.f32.mrf.mxu0
    %v875 = vadd.f32 %v852, %v874
    %v876 = vpop.f32.mrf.mxu0
    %v877 = vadd.f32 %v854, %v876
    %878 = vmatmul.bf16.gmra.mxu0 %v182
    %v879 = vpop.f32.mrf.mxu0
    %v880 = vadd.f32 %v857, %v879
    %v881 = vpop.f32.mrf.mxu0
    %882 = vdwg.mxu0
    %v883 = vmax.f32 %v870, 0.0
    %v884 = vmax.f32 %v872, 0.0
    %v885 = vmax.f32 %v875, 0.0
    %v886 = vmax.f32 %v877, 0.0
    %v887 = vmax.f32 %v880, 0.0
    %s888 = smul.u32 4, 80
    %s889 = smul.u32 %s888, 4
    %s890 = sshll.u32 %s889, 4
    %891 = dma.done [#allocation5], %s890
    %v892 = vpack.c.bf16 %v883, %v883
    %v893 = vpack.c.bf16 %v884, %v884
    %v894 = vpack.c.bf16 %v885, %v885
    %v895 = vpack.c.bf16 %v886, %v886
    %v896 = vpack.c.bf16 %v887, %v887
    %v897 = vld [vmem:[#allocation2] sm:$0xff]
    %v898 = vld [vmem:[#allocation2 + $0x8] sm:$0xff]
    %v899 = vld [vmem:[#allocation2 + $0x10] sm:$0xff]
    %v900 = vld [vmem:[#allocation2 + $0x18] sm:$0xff]
    %v901 = vld [vmem:[#allocation2 + $0x20] sm:$0xff]
    %v902 = vld [vmem:[#allocation2 + $0x28] sm:$0xff]
    %v903 = vld [vmem:[#allocation2 + $0x30] sm:$0xff]
    %v904 = vld [vmem:[#allocation2 + $0x38] sm:$0xff]
    %v905 = vld [vmem:[#allocation2 + $0x40] sm:$0xff]
    %v906 = vld [vmem:[#allocation2 + $0x48] sm:$0xff]
    %v907 = vld [vmem:[#allocation2 + $0x50] sm:$0xff]
    %v908 = vld [vmem:[#allocation2 + $0x58] sm:$0xff]
    %v909 = vld [vmem:[#allocation2 + $0x60] sm:$0xff]
    %v910 = vld [vmem:[#allocation2 + $0x68] sm:$0xff]
    %v911 = vld [vmem:[#allocation2 + $0x70] sm:$0xff]
    %v912 = vld [vmem:[#allocation2 + $0x78] sm:$0xff]
    %v913 = vld [vmem:[#allocation2 + $0x80] sm:$0xff]
    %v914 = vld [vmem:[#allocation2 + $0x88] sm:$0xff]
    %v915 = vld [vmem:[#allocation2 + $0x90] sm:$0xff]
    %v916 = vld [vmem:[#allocation2 + $0x98] sm:$0xff]
    %v917 = vld [vmem:[#allocation2 + $0xa0] sm:$0xff]
    %v918 = vld [vmem:[#allocation2 + $0xa8] sm:$0xff]
    %v919 = vld [vmem:[#allocation2 + $0xb0] sm:$0xff]
    %v920 = vld [vmem:[#allocation2 + $0xb8] sm:$0xff]
    %v921 = vld [vmem:[#allocation2 + $0xc0] sm:$0xff]
    %v922 = vld [vmem:[#allocation2 + $0xc8] sm:$0xff]
    %v923 = vld [vmem:[#allocation2 + $0xd0] sm:$0xff]
    %v924 = vld [vmem:[#allocation2 + $0xd8] sm:$0xff]
    %v925 = vld [vmem:[#allocation2 + $0xe0] sm:$0xff]
    %v926 = vld [vmem:[#allocation2 + $0xe8] sm:$0xff]
    %v927 = vld [vmem:[#allocation2 + $0xf0] sm:$0xff]
    %v928 = vld [vmem:[#allocation2 + $0xf8] sm:$0xff]
    %v929 = vld [vmem:[#allocation2 + $0x100] sm:$0xff]
    %v930 = vld [vmem:[#allocation2 + $0x108] sm:$0xff]
    %v931 = vld [vmem:[#allocation2 + $0x110] sm:$0xff]
    %v932 = vld [vmem:[#allocation2 + $0x118] sm:$0xff]
    %v933 = vld [vmem:[#allocation2 + $0x120] sm:$0xff]
    %v934 = vld [vmem:[#allocation2 + $0x128] sm:$0xff]
    %v935 = vld [vmem:[#allocation2 + $0x130] sm:$0xff]
    %v936 = vld [vmem:[#allocation2 + $0x138] sm:$0xff]
    %v937 = vld [vmem:[#allocation2 + $0x140] sm:$0xff]
    %v938 = vld [vmem:[#allocation2 + $0x148] sm:$0xff]
    %v939 = vld [vmem:[#allocation2 + $0x150] sm:$0xff]
    %v940 = vld [vmem:[#allocation2 + $0x158] sm:$0xff]
    %v941 = vld [vmem:[#allocation2 + $0x160] sm:$0xff]
    %v942 = vld [vmem:[#allocation2 + $0x168] sm:$0xff]
    %v943 = vld [vmem:[#allocation2 + $0x170] sm:$0xff]
    %v944 = vld [vmem:[#allocation2 + $0x178] sm:$0xff]
    %v945 = vld [vmem:[#allocation2 + $0x180] sm:$0xff]
    %v946 = vld [vmem:[#allocation2 + $0x188] sm:$0xff]
    %v947 = vld [vmem:[#allocation2 + $0x190] sm:$0xff]
    %v948 = vld [vmem:[#allocation2 + $0x198] sm:$0xff]
    %v949 = vld [vmem:[#allocation2 + $0x1a0] sm:$0xff]
    %v950 = vld [vmem:[#allocation2 + $0x1a8] sm:$0xff]
    %v951 = vld [vmem:[#allocation2 + $0x1b0] sm:$0xff]
    %v952 = vld [vmem:[#allocation2 + $0x1b8] sm:$0xff]
    %v953 = vld [vmem:[#allocation2 + $0x1c0] sm:$0xff]
    %v954 = vld [vmem:[#allocation2 + $0x1c8] sm:$0xff]
    %v955 = vld [vmem:[#allocation2 + $0x1d0] sm:$0xff]
    %v956 = vld [vmem:[#allocation2 + $0x1d8] sm:$0xff]
    %v957 = vld [vmem:[#allocation2 + $0x1e0] sm:$0xff]
    %v958 = vld [vmem:[#allocation2 + $0x1e8] sm:$0xff]
    %v959 = vld [vmem:[#allocation2 + $0x1f0] sm:$0xff]
    %v960 = vld [vmem:[#allocation2 + $0x1f8] sm:$0xff]
    %v961 = vld [vmem:[#allocation2 + $0x200] sm:$0xff]
    %v962 = vld [vmem:[#allocation2 + $0x208] sm:$0xff]
    %v963 = vld [vmem:[#allocation2 + $0x210] sm:$0xff]
    %v964 = vld [vmem:[#allocation2 + $0x218] sm:$0xff]
    %v965 = vld [vmem:[#allocation2 + $0x220] sm:$0xff]
    %v966 = vld [vmem:[#allocation2 + $0x228] sm:$0xff]
    %v967 = vld [vmem:[#allocation2 + $0x230] sm:$0xff]
    %v968 = vld [vmem:[#allocation2 + $0x238] sm:$0xff]
    %v969 = vld [vmem:[#allocation2 + $0x240] sm:$0xff]
    %v970 = vld [vmem:[#allocation2 + $0x248] sm:$0xff]
    %v971 = vld [vmem:[#allocation2 + $0x250] sm:$0xff]
    %v972 = vld [vmem:[#allocation2 + $0x258] sm:$0xff]
    %v973 = vld [vmem:[#allocation2 + $0x260] sm:$0xff]
    %v974 = vld [vmem:[#allocation2 + $0x268] sm:$0xff]
    %v975 = vld [vmem:[#allocation2 + $0x270] sm:$0xff]
    %v976 = vld [vmem:[#allocation2 + $0x278] sm:$0xff]
    %v977 = vld [vmem:[#allocation2 + $0x280] sm:$0xff]
    %v978 = vld [vmem:[#allocation2 + $0x288] sm:$0xff]
    %v979 = vld [vmem:[#allocation2 + $0x290] sm:$0xff]
    %v980 = vld [vmem:[#allocation2 + $0x298] sm:$0xff]
    %v981 = vld [vmem:[#allocation2 + $0x2a0] sm:$0xff]
    %v982 = vld [vmem:[#allocation2 + $0x2a8] sm:$0xff]
    %v983 = vld [vmem:[#allocation2 + $0x2b0] sm:$0xff]
    %v984 = vld [vmem:[#allocation2 + $0x2b8] sm:$0xff]
    %v985 = vld [vmem:[#allocation2 + $0x2c0] sm:$0xff]
    %v986 = vld [vmem:[#allocation2 + $0x2c8] sm:$0xff]
    %v987 = vld [vmem:[#allocation2 + $0x2d0] sm:$0xff]
    %v988 = vld [vmem:[#allocation2 + $0x2d8] sm:$0xff]
    %v989 = vld [vmem:[#allocation2 + $0x2e0] sm:$0xff]
    %v990 = vld [vmem:[#allocation2 + $0x2e8] sm:$0xff]
    %v991 = vld [vmem:[#allocation2 + $0x2f0] sm:$0xff]
    %v992 = vld [vmem:[#allocation2 + $0x2f8] sm:$0xff]
    %v993 = vld [vmem:[#allocation2 + $0x300] sm:$0xff]
    %v994 = vld [vmem:[#allocation2 + $0x308] sm:$0xff]
    %v995 = vld [vmem:[#allocation2 + $0x310] sm:$0xff]
    %v996 = vld [vmem:[#allocation2 + $0x318] sm:$0xff]
    %v997 = vld [vmem:[#allocation2 + $0x320] sm:$0xff]
    %v998 = vld [vmem:[#allocation2 + $0x328] sm:$0xff]
    %v999 = vld [vmem:[#allocation2 + $0x330] sm:$0xff]
    %v1000 = vld [vmem:[#allocation2 + $0x338] sm:$0xff]
    %v1001 = vld [vmem:[#allocation2 + $0x340] sm:$0xff]
    %v1002 = vld [vmem:[#allocation2 + $0x348] sm:$0xff]
    %v1003 = vld [vmem:[#allocation2 + $0x350] sm:$0xff]
    %v1004 = vld [vmem:[#allocation2 + $0x358] sm:$0xff]
    %v1005 = vld [vmem:[#allocation2 + $0x360] sm:$0xff]
    %v1006 = vld [vmem:[#allocation2 + $0x368] sm:$0xff]
    %v1007 = vld [vmem:[#allocation2 + $0x370] sm:$0xff]
    %v1008 = vld [vmem:[#allocation2 + $0x378] sm:$0xff]
    %v1009 = vld [vmem:[#allocation2 + $0x380] sm:$0xff]
    %v1010 = vld [vmem:[#allocation2 + $0x388] sm:$0xff]
    %v1011 = vld [vmem:[#allocation2 + $0x390] sm:$0xff]
    %v1012 = vld [vmem:[#allocation2 + $0x398] sm:$0xff]
    %v1013 = vld [vmem:[#allocation2 + $0x3a0] sm:$0xff]
    %v1014 = vld [vmem:[#allocation2 + $0x3a8] sm:$0xff]
    %v1015 = vld [vmem:[#allocation2 + $0x3b0] sm:$0xff]
    %v1016 = vld [vmem:[#allocation2 + $0x3b8] sm:$0xff]
    %v1017 = vld [vmem:[#allocation2 + $0x3c0] sm:$0xff]
    %v1018 = vld [vmem:[#allocation2 + $0x3c8] sm:$0xff]
    %v1019 = vld [vmem:[#allocation2 + $0x3d0] sm:$0xff]
    %v1020 = vld [vmem:[#allocation2 + $0x3d8] sm:$0xff]
    %v1021 = vld [vmem:[#allocation2 + $0x3e0] sm:$0xff]
    %v1022 = vld [vmem:[#allocation2 + $0x3e8] sm:$0xff]
    %v1023 = vld [vmem:[#allocation2 + $0x3f0] sm:$0xff]
    %v1024 = vld [vmem:[#allocation2 + $0x3f8] sm:$0xff]
    %v1025 = vld [vmem:[#allocation2 + $0x400] sm:$0xff]
    %v1026 = vld [vmem:[#allocation2 + $0x408] sm:$0xff]
    %v1027 = vld [vmem:[#allocation2 + $0x410] sm:$0xff]
    %v1028 = vld [vmem:[#allocation2 + $0x418] sm:$0xff]
    %v1029 = vld [vmem:[#allocation2 + $0x420] sm:$0xff]
    %v1030 = vld [vmem:[#allocation2 + $0x428] sm:$0xff]
    %v1031 = vld [vmem:[#allocation2 + $0x430] sm:$0xff]
    %v1032 = vld [vmem:[#allocation2 + $0x438] sm:$0xff]
    %v1033 = vld [vmem:[#allocation2 + $0x440] sm:$0xff]
    %v1034 = vld [vmem:[#allocation2 + $0x448] sm:$0xff]
    %v1035 = vld [vmem:[#allocation2 + $0x450] sm:$0xff]
    %v1036 = vld [vmem:[#allocation2 + $0x458] sm:$0xff]
    %v1037 = vld [vmem:[#allocation2 + $0x460] sm:$0xff]
    %v1038 = vld [vmem:[#allocation2 + $0x468] sm:$0xff]
    %v1039 = vld [vmem:[#allocation2 + $0x470] sm:$0xff]
    %v1040 = vld [vmem:[#allocation2 + $0x478] sm:$0xff]
    %v1041 = vld [vmem:[#allocation2 + $0x480] sm:$0xff]
    %v1042 = vld [vmem:[#allocation2 + $0x488] sm:$0xff]
    %v1043 = vld [vmem:[#allocation2 + $0x490] sm:$0xff]
    %v1044 = vld [vmem:[#allocation2 + $0x498] sm:$0xff]
    %v1045 = vld [vmem:[#allocation2 + $0x4a0] sm:$0xff]
    %v1046 = vld [vmem:[#allocation2 + $0x4a8] sm:$0xff]
    %v1047 = vld [vmem:[#allocation2 + $0x4b0] sm:$0xff]
    %v1048 = vld [vmem:[#allocation2 + $0x4b8] sm:$0xff]
    %v1049 = vld [vmem:[#allocation2 + $0x4c0] sm:$0xff]
    %v1050 = vld [vmem:[#allocation2 + $0x4c8] sm:$0xff]
    %v1051 = vld [vmem:[#allocation2 + $0x4d0] sm:$0xff]
    %v1052 = vld [vmem:[#allocation2 + $0x4d8] sm:$0xff]
    %v1053 = vld [vmem:[#allocation2 + $0x4e0] sm:$0xff]
    %v1054 = vld [vmem:[#allocation2 + $0x4e8] sm:$0xff]
    %v1055 = vld [vmem:[#allocation2 + $0x4f0] sm:$0xff]
    %v1056 = vld [vmem:[#allocation2 + $0x4f8] sm:$0xff]
    %v1057 = vld [vmem:[#allocation11] sm:$0xf]
    %v1059 = vperm.slane %v1057, 0
    %v1060 = vperm.slane %v1057, 1
    %v1061 = vperm.slane %v1057, 2
    %v1062 = vperm.slane %v1057, 3
    %v1227 = vunpack.c.l.b16 %v897
    %v1228 = vunpack.c.h.b16 %v897
    %v1229 = vunpack.c.l.b16 %v898
    %v1230 = vunpack.c.h.b16 %v898
    %v1231 = vunpack.c.l.b16 %v899
    %v1232 = vunpack.c.h.b16 %v899
    %v1233 = vunpack.c.l.b16 %v900
    %v1234 = vunpack.c.h.b16 %v900
    %v1235 = vunpack.c.l.b16 %v901
    %v1236 = vunpack.c.h.b16 %v901
    %v1237 = vunpack.c.l.b16 %v902
    %v1238 = vunpack.c.h.b16 %v902
    %v1239 = vunpack.c.l.b16 %v903
    %v1240 = vunpack.c.h.b16 %v903
    %v1241 = vunpack.c.l.b16 %v904
    %v1242 = vunpack.c.h.b16 %v904
    %v1243 = vunpack.c.l.b16 %v905
    %v1244 = vunpack.c.h.b16 %v905
    %v1245 = vunpack.c.l.b16 %v906
    %v1246 = vunpack.c.h.b16 %v906
    %v1247 = vunpack.c.l.b16 %v907
    %v1248 = vunpack.c.h.b16 %v907
    %v1249 = vunpack.c.l.b16 %v908
    %v1250 = vunpack.c.h.b16 %v908
    %v1251 = vunpack.c.l.b16 %v909
    %v1252 = vunpack.c.h.b16 %v909
    %v1253 = vunpack.c.l.b16 %v910
    %v1254 = vunpack.c.h.b16 %v910
    %v1255 = vunpack.c.l.b16 %v911
    %v1256 = vunpack.c.h.b16 %v911
    %v1257 = vunpack.c.l.b16 %v912
    %v1258 = vunpack.c.h.b16 %v912
    %v1259 = vunpack.c.l.b16 %v913
    %v1260 = vunpack.c.h.b16 %v913
    %v1261 = vunpack.c.l.b16 %v914
    %v1262 = vunpack.c.h.b16 %v914
    %v1263 = vunpack.c.l.b16 %v915
    %v1264 = vunpack.c.h.b16 %v915
    %v1265 = vunpack.c.l.b16 %v916
    %v1266 = vunpack.c.h.b16 %v916
    %v1267 = vunpack.c.l.b16 %v917
    %v1268 = vunpack.c.h.b16 %v917
    %v1269 = vunpack.c.l.b16 %v918
    %v1270 = vunpack.c.h.b16 %v918
    %v1271 = vunpack.c.l.b16 %v919
    %v1272 = vunpack.c.h.b16 %v919
    %v1273 = vunpack.c.l.b16 %v920
    %v1274 = vunpack.c.h.b16 %v920
    %v1275 = vunpack.c.l.b16 %v921
    %v1276 = vunpack.c.h.b16 %v921
    %v1277 = vunpack.c.l.b16 %v922
    %v1278 = vunpack.c.h.b16 %v922
    %v1279 = vunpack.c.l.b16 %v923
    %v1280 = vunpack.c.h.b16 %v923
    %v1281 = vunpack.c.l.b16 %v924
    %v1282 = vunpack.c.h.b16 %v924
    %v1283 = vunpack.c.l.b16 %v925
    %v1284 = vunpack.c.h.b16 %v925
    %v1285 = vunpack.c.l.b16 %v926
    %v1286 = vunpack.c.h.b16 %v926
    %v1287 = vunpack.c.l.b16 %v927
    %v1288 = vunpack.c.h.b16 %v927
    %v1289 = vunpack.c.l.b16 %v928
    %v1290 = vunpack.c.h.b16 %v928
    %v1291 = vunpack.c.l.b16 %v929
    %v1292 = vunpack.c.h.b16 %v929
    %v1293 = vunpack.c.l.b16 %v930
    %v1294 = vunpack.c.h.b16 %v930
    %v1295 = vunpack.c.l.b16 %v931
    %v1296 = vunpack.c.h.b16 %v931
    %v1297 = vunpack.c.l.b16 %v932
    %v1298 = vunpack.c.h.b16 %v932
    %v1299 = vunpack.c.l.b16 %v933
    %v1300 = vunpack.c.h.b16 %v933
    %v1301 = vunpack.c.l.b16 %v934
    %v1302 = vunpack.c.h.b16 %v934
    %v1303 = vunpack.c.l.b16 %v935
    %v1304 = vunpack.c.h.b16 %v935
    %v1305 = vunpack.c.l.b16 %v936
    %v1306 = vunpack.c.h.b16 %v936
    %v1307 = vunpack.c.l.b16 %v937
    %v1308 = vunpack.c.h.b16 %v937
    %v1309 = vunpack.c.l.b16 %v938
    %v1310 = vunpack.c.h.b16 %v938
    %v1311 = vunpack.c.l.b16 %v939
    %v1312 = vunpack.c.h.b16 %v939
    %v1313 = vunpack.c.l.b16 %v940
    %v1314 = vunpack.c.h.b16 %v940
    %v1315 = vunpack.c.l.b16 %v941
    %v1316 = vunpack.c.h.b16 %v941
    %v1317 = vunpack.c.l.b16 %v942
    %v1318 = vunpack.c.h.b16 %v942
    %v1319 = vunpack.c.l.b16 %v943
    %v1320 = vunpack.c.h.b16 %v943
    %v1321 = vunpack.c.l.b16 %v944
    %v1322 = vunpack.c.h.b16 %v944
    %v1323 = vunpack.c.l.b16 %v945
    %v1324 = vunpack.c.h.b16 %v945
    %v1325 = vunpack.c.l.b16 %v946
    %v1326 = vunpack.c.h.b16 %v946
    %v1327 = vunpack.c.l.b16 %v947
    %v1328 = vunpack.c.h.b16 %v947
    %v1329 = vunpack.c.l.b16 %v948
    %v1330 = vunpack.c.h.b16 %v948
    %v1331 = vunpack.c.l.b16 %v949
    %v1332 = vunpack.c.h.b16 %v949
    %v1333 = vunpack.c.l.b16 %v950
    %v1334 = vunpack.c.h.b16 %v950
    %v1335 = vunpack.c.l.b16 %v951
    %v1336 = vunpack.c.h.b16 %v951
    %v1337 = vunpack.c.l.b16 %v952
    %v1338 = vunpack.c.h.b16 %v952
    %v1339 = vunpack.c.l.b16 %v953
    %v1340 = vunpack.c.h.b16 %v953
    %v1341 = vunpack.c.l.b16 %v954
    %v1342 = vunpack.c.h.b16 %v954
    %v1343 = vunpack.c.l.b16 %v955
    %v1344 = vunpack.c.h.b16 %v955
    %v1345 = vunpack.c.l.b16 %v956
    %v1346 = vunpack.c.h.b16 %v956
    %v1347 = vunpack.c.l.b16 %v957
    %v1348 = vunpack.c.h.b16 %v957
    %v1349 = vunpack.c.l.b16 %v958
    %v1350 = vunpack.c.h.b16 %v958
    %v1351 = vunpack.c.l.b16 %v959
    %v1352 = vunpack.c.h.b16 %v959
    %v1353 = vunpack.c.l.b16 %v960
    %v1354 = vunpack.c.h.b16 %v960
    %v1355 = vunpack.c.l.b16 %v961
    %v1356 = vunpack.c.h.b16 %v961
    %v1357 = vunpack.c.l.b16 %v962
    %v1358 = vunpack.c.h.b16 %v962
    %v1359 = vunpack.c.l.b16 %v963
    %v1360 = vunpack.c.h.b16 %v963
    %v1361 = vunpack.c.l.b16 %v964
    %v1362 = vunpack.c.h.b16 %v964
    %v1363 = vunpack.c.l.b16 %v965
    %v1364 = vunpack.c.h.b16 %v965
    %v1365 = vunpack.c.l.b16 %v966
    %v1366 = vunpack.c.h.b16 %v966
    %v1367 = vunpack.c.l.b16 %v967
    %v1368 = vunpack.c.h.b16 %v967
    %v1369 = vunpack.c.l.b16 %v968
    %v1370 = vunpack.c.h.b16 %v968
    %v1371 = vunpack.c.l.b16 %v969
    %v1372 = vunpack.c.h.b16 %v969
    %v1373 = vunpack.c.l.b16 %v970
    %v1374 = vunpack.c.h.b16 %v970
    %v1375 = vunpack.c.l.b16 %v971
    %v1376 = vunpack.c.h.b16 %v971
    %v1377 = vunpack.c.l.b16 %v972
    %v1378 = vunpack.c.h.b16 %v972
    %v1379 = vunpack.c.l.b16 %v973
    %v1380 = vunpack.c.h.b16 %v973
    %v1381 = vunpack.c.l.b16 %v974
    %v1382 = vunpack.c.h.b16 %v974
    %v1383 = vunpack.c.l.b16 %v975
    %v1384 = vunpack.c.h.b16 %v975
    %v1385 = vunpack.c.l.b16 %v976
    %v1386 = vunpack.c.h.b16 %v976
    %v1387 = vunpack.c.l.b16 %v977
    %v1388 = vunpack.c.h.b16 %v977
    %v1389 = vunpack.c.l.b16 %v978
    %v1390 = vunpack.c.h.b16 %v978
    %v1391 = vunpack.c.l.b16 %v979
    %v1392 = vunpack.c.h.b16 %v979
    %v1393 = vunpack.c.l.b16 %v980
    %v1394 = vunpack.c.h.b16 %v980
    %v1395 = vunpack.c.l.b16 %v981
    %v1396 = vunpack.c.h.b16 %v981
    %v1397 = vunpack.c.l.b16 %v982
    %v1398 = vunpack.c.h.b16 %v982
    %v1399 = vunpack.c.l.b16 %v983
    %v1400 = vunpack.c.h.b16 %v983
    %v1401 = vunpack.c.l.b16 %v984
    %v1402 = vunpack.c.h.b16 %v984
    %v1403 = vunpack.c.l.b16 %v985
    %v1404 = vunpack.c.h.b16 %v985
    %v1405 = vunpack.c.l.b16 %v986
    %v1406 = vunpack.c.h.b16 %v986
    %v1407 = vunpack.c.l.b16 %v987
    %v1408 = vunpack.c.h.b16 %v987
    %v1409 = vunpack.c.l.b16 %v988
    %v1410 = vunpack.c.h.b16 %v988
    %v1411 = vunpack.c.l.b16 %v989
    %v1412 = vunpack.c.h.b16 %v989
    %v1413 = vunpack.c.l.b16 %v990
    %v1414 = vunpack.c.h.b16 %v990
    %v1415 = vunpack.c.l.b16 %v991
    %v1416 = vunpack.c.h.b16 %v991
    %v1417 = vunpack.c.l.b16 %v992
    %v1418 = vunpack.c.h.b16 %v992
    %v1419 = vunpack.c.l.b16 %v993
    %v1420 = vunpack.c.h.b16 %v993
    %v1421 = vunpack.c.l.b16 %v994
    %v1422 = vunpack.c.h.b16 %v994
    %v1423 = vunpack.c.l.b16 %v995
    %v1424 = vunpack.c.h.b16 %v995
    %v1425 = vunpack.c.l.b16 %v996
    %v1426 = vunpack.c.h.b16 %v996
    %v1427 = vunpack.c.l.b16 %v997
    %v1428 = vunpack.c.h.b16 %v997
    %v1429 = vunpack.c.l.b16 %v998
    %v1430 = vunpack.c.h.b16 %v998
    %v1431 = vunpack.c.l.b16 %v999
    %v1432 = vunpack.c.h.b16 %v999
    %v1433 = vunpack.c.l.b16 %v1000
    %v1434 = vunpack.c.h.b16 %v1000
    %v1435 = vunpack.c.l.b16 %v1001
    %v1436 = vunpack.c.h.b16 %v1001
    %v1437 = vunpack.c.l.b16 %v1002
    %v1438 = vunpack.c.h.b16 %v1002
    %v1439 = vunpack.c.l.b16 %v1003
    %v1440 = vunpack.c.h.b16 %v1003
    %v1441 = vunpack.c.l.b16 %v1004
    %v1442 = vunpack.c.h.b16 %v1004
    %v1443 = vunpack.c.l.b16 %v1005
    %v1444 = vunpack.c.h.b16 %v1005
    %v1445 = vunpack.c.l.b16 %v1006
    %v1446 = vunpack.c.h.b16 %v1006
    %v1447 = vunpack.c.l.b16 %v1007
    %v1448 = vunpack.c.h.b16 %v1007
    %v1449 = vunpack.c.l.b16 %v1008
    %v1450 = vunpack.c.h.b16 %v1008
    %v1451 = vunpack.c.l.b16 %v1009
    %v1452 = vunpack.c.h.b16 %v1009
    %v1453 = vunpack.c.l.b16 %v1010
    %v1454 = vunpack.c.h.b16 %v1010
    %v1455 = vunpack.c.l.b16 %v1011
    %v1456 = vunpack.c.h.b16 %v1011
    %v1457 = vunpack.c.l.b16 %v1012
    %v1458 = vunpack.c.h.b16 %v1012
    %v1459 = vunpack.c.l.b16 %v1013
    %v1460 = vunpack.c.h.b16 %v1013
    %v1461 = vunpack.c.l.b16 %v1014
    %v1462 = vunpack.c.h.b16 %v1014
    %v1463 = vunpack.c.l.b16 %v1015
    %v1464 = vunpack.c.h.b16 %v1015
    %v1465 = vunpack.c.l.b16 %v1016
    %v1466 = vunpack.c.h.b16 %v1016
    %v1467 = vunpack.c.l.b16 %v1017
    %v1468 = vunpack.c.h.b16 %v1017
    %v1469 = vunpack.c.l.b16 %v1018
    %v1470 = vunpack.c.h.b16 %v1018
    %v1471 = vunpack.c.l.b16 %v1019
    %v1472 = vunpack.c.h.b16 %v1019
    %v1473 = vunpack.c.l.b16 %v1020
    %v1474 = vunpack.c.h.b16 %v1020
    %v1475 = vunpack.c.l.b16 %v1021
    %v1476 = vunpack.c.h.b16 %v1021
    %v1477 = vunpack.c.l.b16 %v1022
    %v1478 = vunpack.c.h.b16 %v1022
    %v1479 = vunpack.c.l.b16 %v1023
    %v1480 = vunpack.c.h.b16 %v1023
    %v1481 = vunpack.c.l.b16 %v1024
    %v1482 = vunpack.c.h.b16 %v1024
    %v1483 = vunpack.c.l.b16 %v1025
    %v1484 = vunpack.c.h.b16 %v1025
    %v1485 = vunpack.c.l.b16 %v1026
    %v1486 = vunpack.c.h.b16 %v1026
    %v1487 = vunpack.c.l.b16 %v1027
    %v1488 = vunpack.c.h.b16 %v1027
    %v1489 = vunpack.c.l.b16 %v1028
    %v1490 = vunpack.c.h.b16 %v1028
    %v1491 = vunpack.c.l.b16 %v1029
    %v1492 = vunpack.c.h.b16 %v1029
    %v1493 = vunpack.c.l.b16 %v1030
    %v1494 = vunpack.c.h.b16 %v1030
    %v1495 = vunpack.c.l.b16 %v1031
    %v1496 = vunpack.c.h.b16 %v1031
    %v1497 = vunpack.c.l.b16 %v1032
    %v1498 = vunpack.c.h.b16 %v1032
    %v1499 = vunpack.c.l.b16 %v1033
    %v1500 = vunpack.c.h.b16 %v1033
    %v1501 = vunpack.c.l.b16 %v1034
    %v1502 = vunpack.c.h.b16 %v1034
    %v1503 = vunpack.c.l.b16 %v1035
    %v1504 = vunpack.c.h.b16 %v1035
    %v1505 = vunpack.c.l.b16 %v1036
    %v1506 = vunpack.c.h.b16 %v1036
    %v1507 = vunpack.c.l.b16 %v1037
    %v1508 = vunpack.c.h.b16 %v1037
    %v1509 = vunpack.c.l.b16 %v1038
    %v1510 = vunpack.c.h.b16 %v1038
    %v1511 = vunpack.c.l.b16 %v1039
    %v1512 = vunpack.c.h.b16 %v1039
    %v1513 = vunpack.c.l.b16 %v1040
    %v1514 = vunpack.c.h.b16 %v1040
    %v1515 = vunpack.c.l.b16 %v1041
    %v1516 = vunpack.c.h.b16 %v1041
    %v1517 = vunpack.c.l.b16 %v1042
    %v1518 = vunpack.c.h.b16 %v1042
    %v1519 = vunpack.c.l.b16 %v1043
    %v1520 = vunpack.c.h.b16 %v1043
    %v1521 = vunpack.c.l.b16 %v1044
    %v1522 = vunpack.c.h.b16 %v1044
    %v1523 = vunpack.c.l.b16 %v1045
    %v1524 = vunpack.c.h.b16 %v1045
    %v1525 = vunpack.c.l.b16 %v1046
    %v1526 = vunpack.c.h.b16 %v1046
    %v1527 = vunpack.c.l.b16 %v1047
    %v1528 = vunpack.c.h.b16 %v1047
    %v1529 = vunpack.c.l.b16 %v1048
    %v1530 = vunpack.c.h.b16 %v1048
    %v1531 = vunpack.c.l.b16 %v1049
    %v1532 = vunpack.c.h.b16 %v1049
    %v1533 = vunpack.c.l.b16 %v1050
    %v1534 = vunpack.c.h.b16 %v1050
    %v1535 = vunpack.c.l.b16 %v1051
    %v1536 = vunpack.c.h.b16 %v1051
    %v1537 = vunpack.c.l.b16 %v1052
    %v1538 = vunpack.c.h.b16 %v1052
    %v1539 = vunpack.c.l.b16 %v1053
    %v1540 = vunpack.c.h.b16 %v1053
    %v1541 = vunpack.c.l.b16 %v1054
    %v1542 = vunpack.c.h.b16 %v1054
    %v1543 = vunpack.c.l.b16 %v1055
    %v1544 = vunpack.c.h.b16 %v1055
    %v1545 = vunpack.c.l.b16 %v1056
    %v1546 = vunpack.c.h.b16 %v1056
    %v1547 = vpack.c.b16 %v1231, %v1227
    %v1548 = vpack.c.b16 %v1232, %v1228
    %v1549 = vpack.c.b16 %v1233, %v1229
    %v1550 = vpack.c.b16 %v1234, %v1230
    %v1551 = vpack.c.b16 %v1239, %v1235
    %v1552 = vpack.c.b16 %v1240, %v1236
    %v1553 = vpack.c.b16 %v1241, %v1237
    %v1554 = vpack.c.b16 %v1242, %v1238
    %v1555 = vpack.c.b16 %v1247, %v1243
    %v1556 = vpack.c.b16 %v1248, %v1244
    %v1557 = vpack.c.b16 %v1249, %v1245
    %v1558 = vpack.c.b16 %v1250, %v1246
    %v1559 = vpack.c.b16 %v1255, %v1251
    %v1560 = vpack.c.b16 %v1256, %v1252
    %v1561 = vpack.c.b16 %v1257, %v1253
    %v1562 = vpack.c.b16 %v1258, %v1254
    %v1563 = vpack.c.b16 %v1263, %v1259
    %v1564 = vpack.c.b16 %v1264, %v1260
    %v1565 = vpack.c.b16 %v1265, %v1261
    %v1566 = vpack.c.b16 %v1266, %v1262
    %v1567 = vpack.c.b16 %v1271, %v1267
    %v1568 = vpack.c.b16 %v1272, %v1268
    %v1569 = vpack.c.b16 %v1273, %v1269
    %v1570 = vpack.c.b16 %v1274, %v1270
    %v1571 = vpack.c.b16 %v1279, %v1275
    %v1572 = vpack.c.b16 %v1280, %v1276
    %v1573 = vpack.c.b16 %v1281, %v1277
    %v1574 = vpack.c.b16 %v1282, %v1278
    %v1575 = vpack.c.b16 %v1287, %v1283
    %v1576 = vpack.c.b16 %v1288, %v1284
    %v1577 = vpack.c.b16 %v1289, %v1285
    %v1578 = vpack.c.b16 %v1290, %v1286
    %v1579 = vpack.c.b16 %v1295, %v1291
    %v1580 = vpack.c.b16 %v1296, %v1292
    %v1581 = vpack.c.b16 %v1297, %v1293
    %v1582 = vpack.c.b16 %v1298, %v1294
    %v1583 = vpack.c.b16 %v1303, %v1299
    %v1584 = vpack.c.b16 %v1304, %v1300
    %v1585 = vpack.c.b16 %v1305, %v1301
    %v1586 = vpack.c.b16 %v1306, %v1302
    %v1587 = vpack.c.b16 %v1311, %v1307
    %v1588 = vpack.c.b16 %v1312, %v1308
    %v1589 = vpack.c.b16 %v1313, %v1309
    %v1590 = vpack.c.b16 %v1314, %v1310
    %v1591 = vpack.c.b16 %v1319, %v1315
    %v1592 = vpack.c.b16 %v1320, %v1316
    %v1593 = vpack.c.b16 %v1321, %v1317
    %v1594 = vpack.c.b16 %v1322, %v1318
    %v1595 = vpack.c.b16 %v1327, %v1323
    %v1596 = vpack.c.b16 %v1328, %v1324
    %v1597 = vpack.c.b16 %v1329, %v1325
    %v1598 = vpack.c.b16 %v1330, %v1326
    %v1599 = vpack.c.b16 %v1335, %v1331
    %v1600 = vpack.c.b16 %v1336, %v1332
    %v1601 = vpack.c.b16 %v1337, %v1333
    %v1602 = vpack.c.b16 %v1338, %v1334
    %v1603 = vpack.c.b16 %v1343, %v1339
    %v1604 = vpack.c.b16 %v1344, %v1340
    %v1605 = vpack.c.b16 %v1345, %v1341
    %v1606 = vpack.c.b16 %v1346, %v1342
    %v1607 = vpack.c.b16 %v1351, %v1347
    %v1608 = vpack.c.b16 %v1352, %v1348
    %v1609 = vpack.c.b16 %v1353, %v1349
    %v1610 = vpack.c.b16 %v1354, %v1350
    %v1611 = vpack.c.b16 %v1359, %v1355
    %v1612 = vpack.c.b16 %v1360, %v1356
    %v1613 = vpack.c.b16 %v1361, %v1357
    %v1614 = vpack.c.b16 %v1362, %v1358
    %v1615 = vpack.c.b16 %v1367, %v1363
    %v1616 = vpack.c.b16 %v1368, %v1364
    %v1617 = vpack.c.b16 %v1369, %v1365
    %v1618 = vpack.c.b16 %v1370, %v1366
    %v1619 = vpack.c.b16 %v1375, %v1371
    %v1620 = vpack.c.b16 %v1376, %v1372
    %v1621 = vpack.c.b16 %v1377, %v1373
    %v1622 = vpack.c.b16 %v1378, %v1374
    %v1623 = vpack.c.b16 %v1383, %v1379
    %v1624 = vpack.c.b16 %v1384, %v1380
    %v1625 = vpack.c.b16 %v1385, %v1381
    %v1626 = vpack.c.b16 %v1386, %v1382
    %v1627 = vpack.c.b16 %v1391, %v1387
    %v1628 = vpack.c.b16 %v1392, %v1388
    %v1629 = vpack.c.b16 %v1393, %v1389
    %v1630 = vpack.c.b16 %v1394, %v1390
    %v1631 = vpack.c.b16 %v1399, %v1395
    %v1632 = vpack.c.b16 %v1400, %v1396
    %v1633 = vpack.c.b16 %v1401, %v1397
    %v1634 = vpack.c.b16 %v1402, %v1398
    %v1635 = vpack.c.b16 %v1407, %v1403
    %v1636 = vpack.c.b16 %v1408, %v1404
    %v1637 = vpack.c.b16 %v1409, %v1405
    %v1638 = vpack.c.b16 %v1410, %v1406
    %v1639 = vpack.c.b16 %v1415, %v1411
    %v1640 = vpack.c.b16 %v1416, %v1412
    %v1641 = vpack.c.b16 %v1417, %v1413
    %v1642 = vpack.c.b16 %v1418, %v1414
    %v1643 = vpack.c.b16 %v1423, %v1419
    %v1644 = vpack.c.b16 %v1424, %v1420
    %v1645 = vpack.c.b16 %v1425, %v1421
    %v1646 = vpack.c.b16 %v1426, %v1422
    %v1647 = vpack.c.b16 %v1431, %v1427
    %v1648 = vpack.c.b16 %v1432, %v1428
    %v1649 = vpack.c.b16 %v1433, %v1429
    %v1650 = vpack.c.b16 %v1434, %v1430
    %v1651 = vpack.c.b16 %v1439, %v1435
    %v1652 = vpack.c.b16 %v1440, %v1436
    %v1653 = vpack.c.b16 %v1441, %v1437
    %v1654 = vpack.c.b16 %v1442, %v1438
    %v1655 = vpack.c.b16 %v1447, %v1443
    %v1656 = vpack.c.b16 %v1448, %v1444
    %v1657 = vpack.c.b16 %v1449, %v1445
    %v1658 = vpack.c.b16 %v1450, %v1446
    %v1659 = vpack.c.b16 %v1455, %v1451
    %v1660 = vpack.c.b16 %v1456, %v1452
    %v1661 = vpack.c.b16 %v1457, %v1453
    %v1662 = vpack.c.b16 %v1458, %v1454
    %v1663 = vpack.c.b16 %v1463, %v1459
    %v1664 = vpack.c.b16 %v1464, %v1460
    %v1665 = vpack.c.b16 %v1465, %v1461
    %v1666 = vpack.c.b16 %v1466, %v1462
    %v1667 = vpack.c.b16 %v1471, %v1467
    %v1668 = vpack.c.b16 %v1472, %v1468
    %v1669 = vpack.c.b16 %v1473, %v1469
    %v1670 = vpack.c.b16 %v1474, %v1470
    %v1671 = vpack.c.b16 %v1479, %v1475
    %v1672 = vpack.c.b16 %v1480, %v1476
    %v1673 = vpack.c.b16 %v1481, %v1477
    %v1674 = vpack.c.b16 %v1482, %v1478
    %v1675 = vpack.c.b16 %v1487, %v1483
    %v1676 = vpack.c.b16 %v1488, %v1484
    %v1677 = vpack.c.b16 %v1489, %v1485
    %v1678 = vpack.c.b16 %v1490, %v1486
    %v1679 = vpack.c.b16 %v1495, %v1491
    %v1680 = vpack.c.b16 %v1496, %v1492
    %v1681 = vpack.c.b16 %v1497, %v1493
    %v1682 = vpack.c.b16 %v1498, %v1494
    %v1683 = vpack.c.b16 %v1503, %v1499
    %v1684 = vpack.c.b16 %v1504, %v1500
    %v1685 = vpack.c.b16 %v1505, %v1501
    %v1686 = vpack.c.b16 %v1506, %v1502
    %v1687 = vpack.c.b16 %v1511, %v1507
    %v1688 = vpack.c.b16 %v1512, %v1508
    %v1689 = vpack.c.b16 %v1513, %v1509
    %v1690 = vpack.c.b16 %v1514, %v1510
    %v1691 = vpack.c.b16 %v1519, %v1515
    %v1692 = vpack.c.b16 %v1520, %v1516
    %v1693 = vpack.c.b16 %v1521, %v1517
    %v1694 = vpack.c.b16 %v1522, %v1518
    %v1695 = vpack.c.b16 %v1527, %v1523
    %v1696 = vpack.c.b16 %v1528, %v1524
    %v1697 = vpack.c.b16 %v1529, %v1525
    %v1698 = vpack.c.b16 %v1530, %v1526
    %v1699 = vpack.c.b16 %v1535, %v1531
    %v1700 = vpack.c.b16 %v1536, %v1532
    %v1701 = vpack.c.b16 %v1537, %v1533
    %v1702 = vpack.c.b16 %v1538, %v1534
    %v1703 = vpack.c.b16 %v1543, %v1539
    %v1704 = vpack.c.b16 %v1544, %v1540
    %v1705 = vpack.c.b16 %v1545, %v1541
    %v1706 = vpack.c.b16 %v1546, %v1542
    %1867 = vmatpush.bf16.msra.mxu0 %v1575
    %1868 = vmatpush.bf16.msra.mxu0 %v1571
    %1869 = vmatpush.bf16.msra.mxu0 %v1567
    %1870 = vmatpush.bf16.msra.mxu0 %v1563
    %1871 = vmatpush.bf16.msra.mxu0 %v1559
    %1872 = vmatpush.bf16.msra.mxu0 %v1555
    %1873 = vmatpush.bf16.msra.mxu0 %v1551
    %1874 = vmatpush.bf16.msra.mxu0 %v1547
    %1875 = vmatmul.bf16.gmra.mxu0 %v892
    %v1876 = vpop.f32.mrf.mxu0
    %v1877 = vadd.f32 %v1059, %v1876
    %v1878 = vpop.f32.mrf.mxu0
    %1879 = vdwg.mxu0
    %1880 = vmatpush.bf16.msra.mxu0 %v1607
    %1881 = vmatpush.bf16.msra.mxu0 %v1603
    %1882 = vmatpush.bf16.msra.mxu0 %v1599
    %1883 = vmatpush.bf16.msra.mxu0 %v1595
    %1884 = vmatpush.bf16.msra.mxu0 %v1591
    %1885 = vmatpush.bf16.msra.mxu0 %v1587
    %1886 = vmatpush.bf16.msra.mxu0 %v1583
    %1887 = vmatpush.bf16.msra.mxu0 %v1579
    %1888 = vmatmul.bf16.gmra.mxu0 %v893
    %v1889 = vpop.f32.mrf.mxu0
    %v1890 = vadd.f32 %v1877, %v1889
    %v1891 = vpop.f32.mrf.mxu0
    %1892 = vdwg.mxu0
    %1893 = vmatpush.bf16.msra.mxu0 %v1639
    %1894 = vmatpush.bf16.msra.mxu0 %v1635
    %1895 = vmatpush.bf16.msra.mxu0 %v1631
    %1896 = vmatpush.bf16.msra.mxu0 %v1627
    %1897 = vmatpush.bf16.msra.mxu0 %v1623
    %1898 = vmatpush.bf16.msra.mxu0 %v1619
    %1899 = vmatpush.bf16.msra.mxu0 %v1615
    %1900 = vmatpush.bf16.msra.mxu0 %v1611
    %1901 = vmatmul.bf16.gmra.mxu0 %v894
    %v1902 = vpop.f32.mrf.mxu0
    %v1903 = vadd.f32 %v1890, %v1902
    %v1904 = vpop.f32.mrf.mxu0
    %1905 = vdwg.mxu0
    %1906 = vmatpush.bf16.msra.mxu0 %v1671
    %1907 = vmatpush.bf16.msra.mxu0 %v1667
    %1908 = vmatpush.bf16.msra.mxu0 %v1663
    %1909 = vmatpush.bf16.msra.mxu0 %v1659
    %1910 = vmatpush.bf16.msra.mxu0 %v1655
    %1911 = vmatpush.bf16.msra.mxu0 %v1651
    %1912 = vmatpush.bf16.msra.mxu0 %v1647
    %1913 = vmatpush.bf16.msra.mxu0 %v1643
    %1914 = vmatmul.bf16.gmra.mxu0 %v895
    %v1915 = vpop.f32.mrf.mxu0
    %v1916 = vadd.f32 %v1903, %v1915
    %v1917 = vpop.f32.mrf.mxu0
    %1918 = vdwg.mxu0
    %1919 = vmatpush.bf16.msra.mxu0 %v1703
    %1920 = vmatpush.bf16.msra.mxu0 %v1699
    %1921 = vmatpush.bf16.msra.mxu0 %v1695
    %1922 = vmatpush.bf16.msra.mxu0 %v1691
    %1923 = vmatpush.bf16.msra.mxu0 %v1687
    %1924 = vmatpush.bf16.msra.mxu0 %v1683
    %1925 = vmatpush.bf16.msra.mxu0 %v1679
    %1926 = vmatpush.bf16.msra.mxu0 %v1675
    %1927 = vmatmul.bf16.gmra.mxu0 %v896
    %v1928 = vpop.f32.mrf.mxu0
    %v1929 = vadd.f32 %v1916, %v1928
    %v1930 = vpop.f32.mrf.mxu0
    %1931 = vdwg.mxu0
    %1932 = vmatpush.bf16.msra.mxu0 %v1576
    %1933 = vmatpush.bf16.msra.mxu0 %v1572
    %1934 = vmatpush.bf16.msra.mxu0 %v1568
    %1935 = vmatpush.bf16.msra.mxu0 %v1564
    %1936 = vmatpush.bf16.msra.mxu0 %v1560
    %1937 = vmatpush.bf16.msra.mxu0 %v1556
    %1938 = vmatpush.bf16.msra.mxu0 %v1552
    %1939 = vmatpush.bf16.msra.mxu0 %v1548
    %1940 = vmatmul.bf16.gmra.mxu0 %v892
    %v1941 = vpop.f32.mrf.mxu0
    %v1942 = vadd.f32 %v1060, %v1941
    %v1943 = vpop.f32.mrf.mxu0
    %1944 = vdwg.mxu0
    %1945 = vmatpush.bf16.msra.mxu0 %v1608
    %1946 = vmatpush.bf16.msra.mxu0 %v1604
    %1947 = vmatpush.bf16.msra.mxu0 %v1600
    %1948 = vmatpush.bf16.msra.mxu0 %v1596
    %1949 = vmatpush.bf16.msra.mxu0 %v1592
    %1950 = vmatpush.bf16.msra.mxu0 %v1588
    %1951 = vmatpush.bf16.msra.mxu0 %v1584
    %1952 = vmatpush.bf16.msra.mxu0 %v1580
    %1953 = vmatmul.bf16.gmra.mxu0 %v893
    %v1954 = vpop.f32.mrf.mxu0
    %v1955 = vadd.f32 %v1942, %v1954
    %v1956 = vpop.f32.mrf.mxu0
    %1957 = vdwg.mxu0
    %1958 = vmatpush.bf16.msra.mxu0 %v1640
    %1959 = vmatpush.bf16.msra.mxu0 %v1636
    %1960 = vmatpush.bf16.msra.mxu0 %v1632
    %1961 = vmatpush.bf16.msra.mxu0 %v1628
    %1962 = vmatpush.bf16.msra.mxu0 %v1624
    %1963 = vmatpush.bf16.msra.mxu0 %v1620
    %1964 = vmatpush.bf16.msra.mxu0 %v1616
    %1965 = vmatpush.bf16.msra.mxu0 %v1612
    %1966 = vmatmul.bf16.gmra.mxu0 %v894
    %v1967 = vpop.f32.mrf.mxu0
    %v1968 = vadd.f32 %v1955, %v1967
    %v1969 = vpop.f32.mrf.mxu0
    %1970 = vdwg.mxu0
    %1971 = vmatpush.bf16.msra.mxu0 %v1672
    %1972 = vmatpush.bf16.msra.mxu0 %v1668
    %1973 = vmatpush.bf16.msra.mxu0 %v1664
    %1974 = vmatpush.bf16.msra.mxu0 %v1660
    %1975 = vmatpush.bf16.msra.mxu0 %v1656
    %1976 = vmatpush.bf16.msra.mxu0 %v1652
    %1977 = vmatpush.bf16.msra.mxu0 %v1648
    %1978 = vmatpush.bf16.msra.mxu0 %v1644
    %1979 = vmatmul.bf16.gmra.mxu0 %v895
    %v1980 = vpop.f32.mrf.mxu0
    %v1981 = vadd.f32 %v1968, %v1980
    %v1982 = vpop.f32.mrf.mxu0
    %1983 = vdwg.mxu0
    %1984 = vmatpush.bf16.msra.mxu0 %v1704
    %1985 = vmatpush.bf16.msra.mxu0 %v1700
    %1986 = vmatpush.bf16.msra.mxu0 %v1696
    %1987 = vmatpush.bf16.msra.mxu0 %v1692
    %1988 = vmatpush.bf16.msra.mxu0 %v1688
    %1989 = vmatpush.bf16.msra.mxu0 %v1684
    %1990 = vmatpush.bf16.msra.mxu0 %v1680
    %1991 = vmatpush.bf16.msra.mxu0 %v1676
    %1992 = vmatmul.bf16.gmra.mxu0 %v896
    %v1993 = vpop.f32.mrf.mxu0
    %v1994 = vadd.f32 %v1981, %v1993
    %v1995 = vpop.f32.mrf.mxu0
    %1996 = vdwg.mxu0
    %1997 = vmatpush.bf16.msra.mxu0 %v1577
    %1998 = vmatpush.bf16.msra.mxu0 %v1573
    %1999 = vmatpush.bf16.msra.mxu0 %v1569
    %2000 = vmatpush.bf16.msra.mxu0 %v1565
    %2001 = vmatpush.bf16.msra.mxu0 %v1561
    %2002 = vmatpush.bf16.msra.mxu0 %v1557
    %2003 = vmatpush.bf16.msra.mxu0 %v1553
    %2004 = vmatpush.bf16.msra.mxu0 %v1549
    %2005 = vmatmul.bf16.gmra.mxu0 %v892
    %v2006 = vpop.f32.mrf.mxu0
    %v2007 = vadd.f32 %v1061, %v2006
    %v2008 = vpop.f32.mrf.mxu0
    %2009 = vdwg.mxu0
    %2010 = vmatpush.bf16.msra.mxu0 %v1609
    %2011 = vmatpush.bf16.msra.mxu0 %v1605
    %2012 = vmatpush.bf16.msra.mxu0 %v1601
    %2013 = vmatpush.bf16.msra.mxu0 %v1597
    %2014 = vmatpush.bf16.msra.mxu0 %v1593
    %2015 = vmatpush.bf16.msra.mxu0 %v1589
    %2016 = vmatpush.bf16.msra.mxu0 %v1585
    %2017 = vmatpush.bf16.msra.mxu0 %v1581
    %2018 = vmatmul.bf16.gmra.mxu0 %v893
    %v2019 = vpop.f32.mrf.mxu0
    %v2020 = vadd.f32 %v2007, %v2019
    %v2021 = vpop.f32.mrf.mxu0
    %2022 = vdwg.mxu0
    %2023 = vmatpush.bf16.msra.mxu0 %v1641
    %2024 = vmatpush.bf16.msra.mxu0 %v1637
    %2025 = vmatpush.bf16.msra.mxu0 %v1633
    %2026 = vmatpush.bf16.msra.mxu0 %v1629
    %2027 = vmatpush.bf16.msra.mxu0 %v1625
    %2028 = vmatpush.bf16.msra.mxu0 %v1621
    %2029 = vmatpush.bf16.msra.mxu0 %v1617
    %2030 = vmatpush.bf16.msra.mxu0 %v1613
    %2031 = vmatmul.bf16.gmra.mxu0 %v894
    %v2032 = vpop.f32.mrf.mxu0
    %v2033 = vadd.f32 %v2020, %v2032
    %v2034 = vpop.f32.mrf.mxu0
    %2035 = vdwg.mxu0
    %2036 = vmatpush.bf16.msra.mxu0 %v1673
    %2037 = vmatpush.bf16.msra.mxu0 %v1669
    %2038 = vmatpush.bf16.msra.mxu0 %v1665
    %2039 = vmatpush.bf16.msra.mxu0 %v1661
    %2040 = vmatpush.bf16.msra.mxu0 %v1657
    %2041 = vmatpush.bf16.msra.mxu0 %v1653
    %2042 = vmatpush.bf16.msra.mxu0 %v1649
    %2043 = vmatpush.bf16.msra.mxu0 %v1645
    %2044 = vmatmul.bf16.gmra.mxu0 %v895
    %v2045 = vpop.f32.mrf.mxu0
    %v2046 = vadd.f32 %v2033, %v2045
    %v2047 = vpop.f32.mrf.mxu0
    %2048 = vdwg.mxu0
    %2049 = vmatpush.bf16.msra.mxu0 %v1705
    %2050 = vmatpush.bf16.msra.mxu0 %v1701
    %2051 = vmatpush.bf16.msra.mxu0 %v1697
    %2052 = vmatpush.bf16.msra.mxu0 %v1693
    %2053 = vmatpush.bf16.msra.mxu0 %v1689
    %2054 = vmatpush.bf16.msra.mxu0 %v1685
    %2055 = vmatpush.bf16.msra.mxu0 %v1681
    %2056 = vmatpush.bf16.msra.mxu0 %v1677
    %2057 = vmatmul.bf16.gmra.mxu0 %v896
    %v2058 = vpop.f32.mrf.mxu0
    %v2059 = vadd.f32 %v2046, %v2058
    %v2060 = vpop.f32.mrf.mxu0
    %2061 = vdwg.mxu0
    %2062 = vmatpush.bf16.msra.mxu0 %v1578
    %2063 = vmatpush.bf16.msra.mxu0 %v1574
    %2064 = vmatpush.bf16.msra.mxu0 %v1570
    %2065 = vmatpush.bf16.msra.mxu0 %v1566
    %2066 = vmatpush.bf16.msra.mxu0 %v1562
    %2067 = vmatpush.bf16.msra.mxu0 %v1558
    %2068 = vmatpush.bf16.msra.mxu0 %v1554
    %2069 = vmatpush.bf16.msra.mxu0 %v1550
    %2070 = vmatmul.bf16.gmra.mxu0 %v892
    %v2071 = vpop.f32.mrf.mxu0
    %v2072 = vadd.f32 %v1062, %v2071
    %v2073 = vpop.f32.mrf.mxu0
    %2074 = vdwg.mxu0
    %2075 = vmatpush.bf16.msra.mxu0 %v1610
    %2076 = vmatpush.bf16.msra.mxu0 %v1606
    %2077 = vmatpush.bf16.msra.mxu0 %v1602
    %2078 = vmatpush.bf16.msra.mxu0 %v1598
    %2079 = vmatpush.bf16.msra.mxu0 %v1594
    %2080 = vmatpush.bf16.msra.mxu0 %v1590
    %2081 = vmatpush.bf16.msra.mxu0 %v1586
    %2082 = vmatpush.bf16.msra.mxu0 %v1582
    %2083 = vmatmul.bf16.gmra.mxu0 %v893
    %v2084 = vpop.f32.mrf.mxu0
    %v2085 = vadd.f32 %v2072, %v2084
    %v2086 = vpop.f32.mrf.mxu0
    %2087 = vdwg.mxu0
    %2088 = vmatpush.bf16.msra.mxu0 %v1642
    %2089 = vmatpush.bf16.msra.mxu0 %v1638
    %2090 = vmatpush.bf16.msra.mxu0 %v1634
    %2091 = vmatpush.bf16.msra.mxu0 %v1630
    %2092 = vmatpush.bf16.msra.mxu0 %v1626
    %2093 = vmatpush.bf16.msra.mxu0 %v1622
    %2094 = vmatpush.bf16.msra.mxu0 %v1618
    %2095 = vmatpush.bf16.msra.mxu0 %v1614
    %2096 = vmatmul.bf16.gmra.mxu0 %v894
    %v2097 = vpop.f32.mrf.mxu0
    %v2098 = vadd.f32 %v2085, %v2097
    %v2099 = vpop.f32.mrf.mxu0
    %2100 = vdwg.mxu0
    %2101 = vmatpush.bf16.msra.mxu0 %v1674
    %2102 = vmatpush.bf16.msra.mxu0 %v1670
    %2103 = vmatpush.bf16.msra.mxu0 %v1666
    %2104 = vmatpush.bf16.msra.mxu0 %v1662
    %2105 = vmatpush.bf16.msra.mxu0 %v1658
    %2106 = vmatpush.bf16.msra.mxu0 %v1654
    %2107 = vmatpush.bf16.msra.mxu0 %v1650
    %2108 = vmatpush.bf16.msra.mxu0 %v1646
    %2109 = vmatmul.bf16.gmra.mxu0 %v895
    %v2110 = vpop.f32.mrf.mxu0
    %v2111 = vadd.f32 %v2098, %v2110
    %v2112 = vpop.f32.mrf.mxu0
    %2113 = vdwg.mxu0
    %2114 = vmatpush.bf16.msra.mxu0 %v1706
    %2115 = vmatpush.bf16.msra.mxu0 %v1702
    %2116 = vmatpush.bf16.msra.mxu0 %v1698
    %2117 = vmatpush.bf16.msra.mxu0 %v1694
    %2118 = vmatpush.bf16.msra.mxu0 %v1690
    %2119 = vmatpush.bf16.msra.mxu0 %v1686
    %2120 = vmatpush.bf16.msra.mxu0 %v1682
    %2121 = vmatpush.bf16.msra.mxu0 %v1678
    %2122 = vmatmul.bf16.gmra.mxu0 %v896
    %v2123 = vpop.f32.mrf.mxu0
    %v2124 = vadd.f32 %v2111, %v2123
    %v2125 = vpop.f32.mrf.mxu0
    %2126 = vdwg.mxu0
    %v2127 = vmax.f32 %v1929, 0.0
    %v2128 = vmax.f32 %v1994, 0.0
    %v2129 = vmax.f32 %v2059, 0.0
    %v2130 = vmax.f32 %v2124, 0.0
    %s2131 = smul.u32 4, 64
    %s2132 = smul.u32 %s2131, 4
    %s2133 = sshll.u32 %s2132, 4
    %2134 = dma.done %s91, %s2133
    %v2135 = vpack.c.bf16 %v2127, %v2127
    %v2136 = vpack.c.bf16 %v2128, %v2128
    %v2137 = vpack.c.bf16 %v2129, %v2129
    %v2138 = vpack.c.bf16 %v2130, %v2130
    %v2139 = vld [vmem:[#allocation3] sm:$0xff]
    %v2140 = vld [vmem:[#allocation3 + $0x8] sm:$0xff]
    %v2141 = vld [vmem:[#allocation3 + $0x10] sm:$0xff]
    %v2142 = vld [vmem:[#allocation3 + $0x18] sm:$0xff]
    %v2143 = vld [vmem:[#allocation3 + $0x20] sm:$0xff]
    %v2144 = vld [vmem:[#allocation3 + $0x28] sm:$0xff]
    %v2145 = vld [vmem:[#allocation3 + $0x30] sm:$0xff]
    %v2146 = vld [vmem:[#allocation3 + $0x38] sm:$0xff]
    %v2147 = vld [vmem:[#allocation3 + $0x40] sm:$0xff]
    %v2148 = vld [vmem:[#allocation3 + $0x48] sm:$0xff]
    %v2149 = vld [vmem:[#allocation3 + $0x50] sm:$0xff]
    %v2150 = vld [vmem:[#allocation3 + $0x58] sm:$0xff]
    %v2151 = vld [vmem:[#allocation3 + $0x60] sm:$0xff]
    %v2152 = vld [vmem:[#allocation3 + $0x68] sm:$0xff]
    %v2153 = vld [vmem:[#allocation3 + $0x70] sm:$0xff]
    %v2154 = vld [vmem:[#allocation3 + $0x78] sm:$0xff]
    %v2155 = vld [vmem:[#allocation3 + $0x80] sm:$0xff]
    %v2156 = vld [vmem:[#allocation3 + $0x88] sm:$0xff]
    %v2157 = vld [vmem:[#allocation3 + $0x90] sm:$0xff]
    %v2158 = vld [vmem:[#allocation3 + $0x98] sm:$0xff]
    %v2159 = vld [vmem:[#allocation3 + $0xa0] sm:$0xff]
    %v2160 = vld [vmem:[#allocation3 + $0xa8] sm:$0xff]
    %v2161 = vld [vmem:[#allocation3 + $0xb0] sm:$0xff]
    %v2162 = vld [vmem:[#allocation3 + $0xb8] sm:$0xff]
    %v2163 = vld [vmem:[#allocation3 + $0xc0] sm:$0xff]
    %v2164 = vld [vmem:[#allocation3 + $0xc8] sm:$0xff]
    %v2165 = vld [vmem:[#allocation3 + $0xd0] sm:$0xff]
    %v2166 = vld [vmem:[#allocation3 + $0xd8] sm:$0xff]
    %v2167 = vld [vmem:[#allocation3 + $0xe0] sm:$0xff]
    %v2168 = vld [vmem:[#allocation3 + $0xe8] sm:$0xff]
    %v2169 = vld [vmem:[#allocation3 + $0xf0] sm:$0xff]
    %v2170 = vld [vmem:[#allocation3 + $0xf8] sm:$0xff]
    %v2171 = vld [vmem:[#allocation3 + $0x100] sm:$0xff]
    %v2172 = vld [vmem:[#allocation3 + $0x108] sm:$0xff]
    %v2173 = vld [vmem:[#allocation3 + $0x110] sm:$0xff]
    %v2174 = vld [vmem:[#allocation3 + $0x118] sm:$0xff]
    %v2175 = vld [vmem:[#allocation3 + $0x120] sm:$0xff]
    %v2176 = vld [vmem:[#allocation3 + $0x128] sm:$0xff]
    %v2177 = vld [vmem:[#allocation3 + $0x130] sm:$0xff]
    %v2178 = vld [vmem:[#allocation3 + $0x138] sm:$0xff]
    %v2179 = vld [vmem:[#allocation3 + $0x140] sm:$0xff]
    %v2180 = vld [vmem:[#allocation3 + $0x148] sm:$0xff]
    %v2181 = vld [vmem:[#allocation3 + $0x150] sm:$0xff]
    %v2182 = vld [vmem:[#allocation3 + $0x158] sm:$0xff]
    %v2183 = vld [vmem:[#allocation3 + $0x160] sm:$0xff]
    %v2184 = vld [vmem:[#allocation3 + $0x168] sm:$0xff]
    %v2185 = vld [vmem:[#allocation3 + $0x170] sm:$0xff]
    %v2186 = vld [vmem:[#allocation3 + $0x178] sm:$0xff]
    %v2187 = vld [vmem:[#allocation3 + $0x180] sm:$0xff]
    %v2188 = vld [vmem:[#allocation3 + $0x188] sm:$0xff]
    %v2189 = vld [vmem:[#allocation3 + $0x190] sm:$0xff]
    %v2190 = vld [vmem:[#allocation3 + $0x198] sm:$0xff]
    %v2191 = vld [vmem:[#allocation3 + $0x1a0] sm:$0xff]
    %v2192 = vld [vmem:[#allocation3 + $0x1a8] sm:$0xff]
    %v2193 = vld [vmem:[#allocation3 + $0x1b0] sm:$0xff]
    %v2194 = vld [vmem:[#allocation3 + $0x1b8] sm:$0xff]
    %v2195 = vld [vmem:[#allocation3 + $0x1c0] sm:$0xff]
    %v2196 = vld [vmem:[#allocation3 + $0x1c8] sm:$0xff]
    %v2197 = vld [vmem:[#allocation3 + $0x1d0] sm:$0xff]
    %v2198 = vld [vmem:[#allocation3 + $0x1d8] sm:$0xff]
    %v2199 = vld [vmem:[#allocation3 + $0x1e0] sm:$0xff]
    %v2200 = vld [vmem:[#allocation3 + $0x1e8] sm:$0xff]
    %v2201 = vld [vmem:[#allocation3 + $0x1f0] sm:$0xff]
    %v2202 = vld [vmem:[#allocation3 + $0x1f8] sm:$0xff]
    %v2203 = vld [vmem:[#allocation3 + $0x200] sm:$0xff]
    %v2204 = vld [vmem:[#allocation3 + $0x208] sm:$0xff]
    %v2205 = vld [vmem:[#allocation3 + $0x210] sm:$0xff]
    %v2206 = vld [vmem:[#allocation3 + $0x218] sm:$0xff]
    %v2207 = vld [vmem:[#allocation3 + $0x220] sm:$0xff]
    %v2208 = vld [vmem:[#allocation3 + $0x228] sm:$0xff]
    %v2209 = vld [vmem:[#allocation3 + $0x230] sm:$0xff]
    %v2210 = vld [vmem:[#allocation3 + $0x238] sm:$0xff]
    %v2211 = vld [vmem:[#allocation3 + $0x240] sm:$0xff]
    %v2212 = vld [vmem:[#allocation3 + $0x248] sm:$0xff]
    %v2213 = vld [vmem:[#allocation3 + $0x250] sm:$0xff]
    %v2214 = vld [vmem:[#allocation3 + $0x258] sm:$0xff]
    %v2215 = vld [vmem:[#allocation3 + $0x260] sm:$0xff]
    %v2216 = vld [vmem:[#allocation3 + $0x268] sm:$0xff]
    %v2217 = vld [vmem:[#allocation3 + $0x270] sm:$0xff]
    %v2218 = vld [vmem:[#allocation3 + $0x278] sm:$0xff]
    %v2219 = vld [vmem:[#allocation3 + $0x280] sm:$0xff]
    %v2220 = vld [vmem:[#allocation3 + $0x288] sm:$0xff]
    %v2221 = vld [vmem:[#allocation3 + $0x290] sm:$0xff]
    %v2222 = vld [vmem:[#allocation3 + $0x298] sm:$0xff]
    %v2223 = vld [vmem:[#allocation3 + $0x2a0] sm:$0xff]
    %v2224 = vld [vmem:[#allocation3 + $0x2a8] sm:$0xff]
    %v2225 = vld [vmem:[#allocation3 + $0x2b0] sm:$0xff]
    %v2226 = vld [vmem:[#allocation3 + $0x2b8] sm:$0xff]
    %v2227 = vld [vmem:[#allocation3 + $0x2c0] sm:$0xff]
    %v2228 = vld [vmem:[#allocation3 + $0x2c8] sm:$0xff]
    %v2229 = vld [vmem:[#allocation3 + $0x2d0] sm:$0xff]
    %v2230 = vld [vmem:[#allocation3 + $0x2d8] sm:$0xff]
    %v2231 = vld [vmem:[#allocation3 + $0x2e0] sm:$0xff]
    %v2232 = vld [vmem:[#allocation3 + $0x2e8] sm:$0xff]
    %v2233 = vld [vmem:[#allocation3 + $0x2f0] sm:$0xff]
    %v2234 = vld [vmem:[#allocation3 + $0x2f8] sm:$0xff]
    %v2235 = vld [vmem:[#allocation3 + $0x300] sm:$0xff]
    %v2236 = vld [vmem:[#allocation3 + $0x308] sm:$0xff]
    %v2237 = vld [vmem:[#allocation3 + $0x310] sm:$0xff]
    %v2238 = vld [vmem:[#allocation3 + $0x318] sm:$0xff]
    %v2239 = vld [vmem:[#allocation3 + $0x320] sm:$0xff]
    %v2240 = vld [vmem:[#allocation3 + $0x328] sm:$0xff]
    %v2241 = vld [vmem:[#allocation3 + $0x330] sm:$0xff]
    %v2242 = vld [vmem:[#allocation3 + $0x338] sm:$0xff]
    %v2243 = vld [vmem:[#allocation3 + $0x340] sm:$0xff]
    %v2244 = vld [vmem:[#allocation3 + $0x348] sm:$0xff]
    %v2245 = vld [vmem:[#allocation3 + $0x350] sm:$0xff]
    %v2246 = vld [vmem:[#allocation3 + $0x358] sm:$0xff]
    %v2247 = vld [vmem:[#allocation3 + $0x360] sm:$0xff]
    %v2248 = vld [vmem:[#allocation3 + $0x368] sm:$0xff]
    %v2249 = vld [vmem:[#allocation3 + $0x370] sm:$0xff]
    %v2250 = vld [vmem:[#allocation3 + $0x378] sm:$0xff]
    %v2251 = vld [vmem:[#allocation3 + $0x380] sm:$0xff]
    %v2252 = vld [vmem:[#allocation3 + $0x388] sm:$0xff]
    %v2253 = vld [vmem:[#allocation3 + $0x390] sm:$0xff]
    %v2254 = vld [vmem:[#allocation3 + $0x398] sm:$0xff]
    %v2255 = vld [vmem:[#allocation3 + $0x3a0] sm:$0xff]
    %v2256 = vld [vmem:[#allocation3 + $0x3a8] sm:$0xff]
    %v2257 = vld [vmem:[#allocation3 + $0x3b0] sm:$0xff]
    %v2258 = vld [vmem:[#allocation3 + $0x3b8] sm:$0xff]
    %v2259 = vld [vmem:[#allocation3 + $0x3c0] sm:$0xff]
    %v2260 = vld [vmem:[#allocation3 + $0x3c8] sm:$0xff]
    %v2261 = vld [vmem:[#allocation3 + $0x3d0] sm:$0xff]
    %v2262 = vld [vmem:[#allocation3 + $0x3d8] sm:$0xff]
    %v2263 = vld [vmem:[#allocation3 + $0x3e0] sm:$0xff]
    %v2264 = vld [vmem:[#allocation3 + $0x3e8] sm:$0xff]
    %v2265 = vld [vmem:[#allocation3 + $0x3f0] sm:$0xff]
    %v2266 = vld [vmem:[#allocation3 + $0x3f8] sm:$0xff]
    %v2267 = vld [vmem:[%s6] sm:$0xf]
    %v2269 = vperm.slane %v2267, 0
    %v2270 = vperm.slane %v2267, 1
    %v2271 = vperm.slane %v2267, 2
    %v2272 = vperm.slane %v2267, 3
    %v2405 = vunpack.c.l.b16 %v2139
    %v2406 = vunpack.c.h.b16 %v2139
    %v2407 = vunpack.c.l.b16 %v2140
    %v2408 = vunpack.c.h.b16 %v2140
    %v2409 = vunpack.c.l.b16 %v2141
    %v2410 = vunpack.c.h.b16 %v2141
    %v2411 = vunpack.c.l.b16 %v2142
    %v2412 = vunpack.c.h.b16 %v2142
    %v2413 = vunpack.c.l.b16 %v2143
    %v2414 = vunpack.c.h.b16 %v2143
    %v2415 = vunpack.c.l.b16 %v2144
    %v2416 = vunpack.c.h.b16 %v2144
    %v2417 = vunpack.c.l.b16 %v2145
    %v2418 = vunpack.c.h.b16 %v2145
    %v2419 = vunpack.c.l.b16 %v2146
    %v2420 = vunpack.c.h.b16 %v2146
    %v2421 = vunpack.c.l.b16 %v2147
    %v2422 = vunpack.c.h.b16 %v2147
    %v2423 = vunpack.c.l.b16 %v2148
    %v2424 = vunpack.c.h.b16 %v2148
    %v2425 = vunpack.c.l.b16 %v2149
    %v2426 = vunpack.c.h.b16 %v2149
    %v2427 = vunpack.c.l.b16 %v2150
    %v2428 = vunpack.c.h.b16 %v2150
    %v2429 = vunpack.c.l.b16 %v2151
    %v2430 = vunpack.c.h.b16 %v2151
    %v2431 = vunpack.c.l.b16 %v2152
    %v2432 = vunpack.c.h.b16 %v2152
    %v2433 = vunpack.c.l.b16 %v2153
    %v2434 = vunpack.c.h.b16 %v2153
    %v2435 = vunpack.c.l.b16 %v2154
    %v2436 = vunpack.c.h.b16 %v2154
    %v2437 = vunpack.c.l.b16 %v2155
    %v2438 = vunpack.c.h.b16 %v2155
    %v2439 = vunpack.c.l.b16 %v2156
    %v2440 = vunpack.c.h.b16 %v2156
    %v2441 = vunpack.c.l.b16 %v2157
    %v2442 = vunpack.c.h.b16 %v2157
    %v2443 = vunpack.c.l.b16 %v2158
    %v2444 = vunpack.c.h.b16 %v2158
    %v2445 = vunpack.c.l.b16 %v2159
    %v2446 = vunpack.c.h.b16 %v2159
    %v2447 = vunpack.c.l.b16 %v2160
    %v2448 = vunpack.c.h.b16 %v2160
    %v2449 = vunpack.c.l.b16 %v2161
    %v2450 = vunpack.c.h.b16 %v2161
    %v2451 = vunpack.c.l.b16 %v2162
    %v2452 = vunpack.c.h.b16 %v2162
    %v2453 = vunpack.c.l.b16 %v2163
    %v2454 = vunpack.c.h.b16 %v2163
    %v2455 = vunpack.c.l.b16 %v2164
    %v2456 = vunpack.c.h.b16 %v2164
    %v2457 = vunpack.c.l.b16 %v2165
    %v2458 = vunpack.c.h.b16 %v2165
    %v2459 = vunpack.c.l.b16 %v2166
    %v2460 = vunpack.c.h.b16 %v2166
    %v2461 = vunpack.c.l.b16 %v2167
    %v2462 = vunpack.c.h.b16 %v2167
    %v2463 = vunpack.c.l.b16 %v2168
    %v2464 = vunpack.c.h.b16 %v2168
    %v2465 = vunpack.c.l.b16 %v2169
    %v2466 = vunpack.c.h.b16 %v2169
    %v2467 = vunpack.c.l.b16 %v2170
    %v2468 = vunpack.c.h.b16 %v2170
    %v2469 = vunpack.c.l.b16 %v2171
    %v2470 = vunpack.c.h.b16 %v2171
    %v2471 = vunpack.c.l.b16 %v2172
    %v2472 = vunpack.c.h.b16 %v2172
    %v2473 = vunpack.c.l.b16 %v2173
    %v2474 = vunpack.c.h.b16 %v2173
    %v2475 = vunpack.c.l.b16 %v2174
    %v2476 = vunpack.c.h.b16 %v2174
    %v2477 = vunpack.c.l.b16 %v2175
    %v2478 = vunpack.c.h.b16 %v2175
    %v2479 = vunpack.c.l.b16 %v2176
    %v2480 = vunpack.c.h.b16 %v2176
    %v2481 = vunpack.c.l.b16 %v2177
    %v2482 = vunpack.c.h.b16 %v2177
    %v2483 = vunpack.c.l.b16 %v2178
    %v2484 = vunpack.c.h.b16 %v2178
    %v2485 = vunpack.c.l.b16 %v2179
    %v2486 = vunpack.c.h.b16 %v2179
    %v2487 = vunpack.c.l.b16 %v2180
    %v2488 = vunpack.c.h.b16 %v2180
    %v2489 = vunpack.c.l.b16 %v2181
    %v2490 = vunpack.c.h.b16 %v2181
    %v2491 = vunpack.c.l.b16 %v2182
    %v2492 = vunpack.c.h.b16 %v2182
    %v2493 = vunpack.c.l.b16 %v2183
    %v2494 = vunpack.c.h.b16 %v2183
    %v2495 = vunpack.c.l.b16 %v2184
    %v2496 = vunpack.c.h.b16 %v2184
    %v2497 = vunpack.c.l.b16 %v2185
    %v2498 = vunpack.c.h.b16 %v2185
    %v2499 = vunpack.c.l.b16 %v2186
    %v2500 = vunpack.c.h.b16 %v2186
    %v2501 = vunpack.c.l.b16 %v2187
    %v2502 = vunpack.c.h.b16 %v2187
    %v2503 = vunpack.c.l.b16 %v2188
    %v2504 = vunpack.c.h.b16 %v2188
    %v2505 = vunpack.c.l.b16 %v2189
    %v2506 = vunpack.c.h.b16 %v2189
    %v2507 = vunpack.c.l.b16 %v2190
    %v2508 = vunpack.c.h.b16 %v2190
    %v2509 = vunpack.c.l.b16 %v2191
    %v2510 = vunpack.c.h.b16 %v2191
    %v2511 = vunpack.c.l.b16 %v2192
    %v2512 = vunpack.c.h.b16 %v2192
    %v2513 = vunpack.c.l.b16 %v2193
    %v2514 = vunpack.c.h.b16 %v2193
    %v2515 = vunpack.c.l.b16 %v2194
    %v2516 = vunpack.c.h.b16 %v2194
    %v2517 = vunpack.c.l.b16 %v2195
    %v2518 = vunpack.c.h.b16 %v2195
    %v2519 = vunpack.c.l.b16 %v2196
    %v2520 = vunpack.c.h.b16 %v2196
    %v2521 = vunpack.c.l.b16 %v2197
    %v2522 = vunpack.c.h.b16 %v2197
    %v2523 = vunpack.c.l.b16 %v2198
    %v2524 = vunpack.c.h.b16 %v2198
    %v2525 = vunpack.c.l.b16 %v2199
    %v2526 = vunpack.c.h.b16 %v2199
    %v2527 = vunpack.c.l.b16 %v2200
    %v2528 = vunpack.c.h.b16 %v2200
    %v2529 = vunpack.c.l.b16 %v2201
    %v2530 = vunpack.c.h.b16 %v2201
    %v2531 = vunpack.c.l.b16 %v2202
    %v2532 = vunpack.c.h.b16 %v2202
    %v2533 = vunpack.c.l.b16 %v2203
    %v2534 = vunpack.c.h.b16 %v2203
    %v2535 = vunpack.c.l.b16 %v2204
    %v2536 = vunpack.c.h.b16 %v2204
    %v2537 = vunpack.c.l.b16 %v2205
    %v2538 = vunpack.c.h.b16 %v2205
    %v2539 = vunpack.c.l.b16 %v2206
    %v2540 = vunpack.c.h.b16 %v2206
    %v2541 = vunpack.c.l.b16 %v2207
    %v2542 = vunpack.c.h.b16 %v2207
    %v2543 = vunpack.c.l.b16 %v2208
    %v2544 = vunpack.c.h.b16 %v2208
    %v2545 = vunpack.c.l.b16 %v2209
    %v2546 = vunpack.c.h.b16 %v2209
    %v2547 = vunpack.c.l.b16 %v2210
    %v2548 = vunpack.c.h.b16 %v2210
    %v2549 = vunpack.c.l.b16 %v2211
    %v2550 = vunpack.c.h.b16 %v2211
    %v2551 = vunpack.c.l.b16 %v2212
    %v2552 = vunpack.c.h.b16 %v2212
    %v2553 = vunpack.c.l.b16 %v2213
    %v2554 = vunpack.c.h.b16 %v2213
    %v2555 = vunpack.c.l.b16 %v2214
    %v2556 = vunpack.c.h.b16 %v2214
    %v2557 = vunpack.c.l.b16 %v2215
    %v2558 = vunpack.c.h.b16 %v2215
    %v2559 = vunpack.c.l.b16 %v2216
    %v2560 = vunpack.c.h.b16 %v2216
    %v2561 = vunpack.c.l.b16 %v2217
    %v2562 = vunpack.c.h.b16 %v2217
    %v2563 = vunpack.c.l.b16 %v2218
    %v2564 = vunpack.c.h.b16 %v2218
    %v2565 = vunpack.c.l.b16 %v2219
    %v2566 = vunpack.c.h.b16 %v2219
    %v2567 = vunpack.c.l.b16 %v2220
    %v2568 = vunpack.c.h.b16 %v2220
    %v2569 = vunpack.c.l.b16 %v2221
    %v2570 = vunpack.c.h.b16 %v2221
    %v2571 = vunpack.c.l.b16 %v2222
    %v2572 = vunpack.c.h.b16 %v2222
    %v2573 = vunpack.c.l.b16 %v2223
    %v2574 = vunpack.c.h.b16 %v2223
    %v2575 = vunpack.c.l.b16 %v2224
    %v2576 = vunpack.c.h.b16 %v2224
    %v2577 = vunpack.c.l.b16 %v2225
    %v2578 = vunpack.c.h.b16 %v2225
    %v2579 = vunpack.c.l.b16 %v2226
    %v2580 = vunpack.c.h.b16 %v2226
    %v2581 = vunpack.c.l.b16 %v2227
    %v2582 = vunpack.c.h.b16 %v2227
    %v2583 = vunpack.c.l.b16 %v2228
    %v2584 = vunpack.c.h.b16 %v2228
    %v2585 = vunpack.c.l.b16 %v2229
    %v2586 = vunpack.c.h.b16 %v2229
    %v2587 = vunpack.c.l.b16 %v2230
    %v2588 = vunpack.c.h.b16 %v2230
    %v2589 = vunpack.c.l.b16 %v2231
    %v2590 = vunpack.c.h.b16 %v2231
    %v2591 = vunpack.c.l.b16 %v2232
    %v2592 = vunpack.c.h.b16 %v2232
    %v2593 = vunpack.c.l.b16 %v2233
    %v2594 = vunpack.c.h.b16 %v2233
    %v2595 = vunpack.c.l.b16 %v2234
    %v2596 = vunpack.c.h.b16 %v2234
    %v2597 = vunpack.c.l.b16 %v2235
    %v2598 = vunpack.c.h.b16 %v2235
    %v2599 = vunpack.c.l.b16 %v2236
    %v2600 = vunpack.c.h.b16 %v2236
    %v2601 = vunpack.c.l.b16 %v2237
    %v2602 = vunpack.c.h.b16 %v2237
    %v2603 = vunpack.c.l.b16 %v2238
    %v2604 = vunpack.c.h.b16 %v2238
    %v2605 = vunpack.c.l.b16 %v2239
    %v2606 = vunpack.c.h.b16 %v2239
    %v2607 = vunpack.c.l.b16 %v2240
    %v2608 = vunpack.c.h.b16 %v2240
    %v2609 = vunpack.c.l.b16 %v2241
    %v2610 = vunpack.c.h.b16 %v2241
    %v2611 = vunpack.c.l.b16 %v2242
    %v2612 = vunpack.c.h.b16 %v2242
    %v2613 = vunpack.c.l.b16 %v2243
    %v2614 = vunpack.c.h.b16 %v2243
    %v2615 = vunpack.c.l.b16 %v2244
    %v2616 = vunpack.c.h.b16 %v2244
    %v2617 = vunpack.c.l.b16 %v2245
    %v2618 = vunpack.c.h.b16 %v2245
    %v2619 = vunpack.c.l.b16 %v2246
    %v2620 = vunpack.c.h.b16 %v2246
    %v2621 = vunpack.c.l.b16 %v2247
    %v2622 = vunpack.c.h.b16 %v2247
    %v2623 = vunpack.c.l.b16 %v2248
    %v2624 = vunpack.c.h.b16 %v2248
    %v2625 = vunpack.c.l.b16 %v2249
    %v2626 = vunpack.c.h.b16 %v2249
    %v2627 = vunpack.c.l.b16 %v2250
    %v2628 = vunpack.c.h.b16 %v2250
    %v2629 = vunpack.c.l.b16 %v2251
    %v2630 = vunpack.c.h.b16 %v2251
    %v2631 = vunpack.c.l.b16 %v2252
    %v2632 = vunpack.c.h.b16 %v2252
    %v2633 = vunpack.c.l.b16 %v2253
    %v2634 = vunpack.c.h.b16 %v2253
    %v2635 = vunpack.c.l.b16 %v2254
    %v2636 = vunpack.c.h.b16 %v2254
    %v2637 = vunpack.c.l.b16 %v2255
    %v2638 = vunpack.c.h.b16 %v2255
    %v2639 = vunpack.c.l.b16 %v2256
    %v2640 = vunpack.c.h.b16 %v2256
    %v2641 = vunpack.c.l.b16 %v2257
    %v2642 = vunpack.c.h.b16 %v2257
    %v2643 = vunpack.c.l.b16 %v2258
    %v2644 = vunpack.c.h.b16 %v2258
    %v2645 = vunpack.c.l.b16 %v2259
    %v2646 = vunpack.c.h.b16 %v2259
    %v2647 = vunpack.c.l.b16 %v2260
    %v2648 = vunpack.c.h.b16 %v2260
    %v2649 = vunpack.c.l.b16 %v2261
    %v2650 = vunpack.c.h.b16 %v2261
    %v2651 = vunpack.c.l.b16 %v2262
    %v2652 = vunpack.c.h.b16 %v2262
    %v2653 = vunpack.c.l.b16 %v2263
    %v2654 = vunpack.c.h.b16 %v2263
    %v2655 = vunpack.c.l.b16 %v2264
    %v2656 = vunpack.c.h.b16 %v2264
    %v2657 = vunpack.c.l.b16 %v2265
    %v2658 = vunpack.c.h.b16 %v2265
    %v2659 = vunpack.c.l.b16 %v2266
    %v2660 = vunpack.c.h.b16 %v2266
    %v2661 = vpack.c.b16 %v2409, %v2405
    %v2662 = vpack.c.b16 %v2410, %v2406
    %v2663 = vpack.c.b16 %v2411, %v2407
    %v2664 = vpack.c.b16 %v2412, %v2408
    %v2665 = vpack.c.b16 %v2417, %v2413
    %v2666 = vpack.c.b16 %v2418, %v2414
    %v2667 = vpack.c.b16 %v2419, %v2415
    %v2668 = vpack.c.b16 %v2420, %v2416
    %v2669 = vpack.c.b16 %v2425, %v2421
    %v2670 = vpack.c.b16 %v2426, %v2422
    %v2671 = vpack.c.b16 %v2427, %v2423
    %v2672 = vpack.c.b16 %v2428, %v2424
    %v2673 = vpack.c.b16 %v2433, %v2429
    %v2674 = vpack.c.b16 %v2434, %v2430
    %v2675 = vpack.c.b16 %v2435, %v2431
    %v2676 = vpack.c.b16 %v2436, %v2432
    %v2677 = vpack.c.b16 %v2441, %v2437
    %v2678 = vpack.c.b16 %v2442, %v2438
    %v2679 = vpack.c.b16 %v2443, %v2439
    %v2680 = vpack.c.b16 %v2444, %v2440
    %v2681 = vpack.c.b16 %v2449, %v2445
    %v2682 = vpack.c.b16 %v2450, %v2446
    %v2683 = vpack.c.b16 %v2451, %v2447
    %v2684 = vpack.c.b16 %v2452, %v2448
    %v2685 = vpack.c.b16 %v2457, %v2453
    %v2686 = vpack.c.b16 %v2458, %v2454
    %v2687 = vpack.c.b16 %v2459, %v2455
    %v2688 = vpack.c.b16 %v2460, %v2456
    %v2689 = vpack.c.b16 %v2465, %v2461
    %v2690 = vpack.c.b16 %v2466, %v2462
    %v2691 = vpack.c.b16 %v2467, %v2463
    %v2692 = vpack.c.b16 %v2468, %v2464
    %v2693 = vpack.c.b16 %v2473, %v2469
    %v2694 = vpack.c.b16 %v2474, %v2470
    %v2695 = vpack.c.b16 %v2475, %v2471
    %v2696 = vpack.c.b16 %v2476, %v2472
    %v2697 = vpack.c.b16 %v2481, %v2477
    %v2698 = vpack.c.b16 %v2482, %v2478
    %v2699 = vpack.c.b16 %v2483, %v2479
    %v2700 = vpack.c.b16 %v2484, %v2480
    %v2701 = vpack.c.b16 %v2489, %v2485
    %v2702 = vpack.c.b16 %v2490, %v2486
    %v2703 = vpack.c.b16 %v2491, %v2487
    %v2704 = vpack.c.b16 %v2492, %v2488
    %v2705 = vpack.c.b16 %v2497, %v2493
    %v2706 = vpack.c.b16 %v2498, %v2494
    %v2707 = vpack.c.b16 %v2499, %v2495
    %v2708 = vpack.c.b16 %v2500, %v2496
    %v2709 = vpack.c.b16 %v2505, %v2501
    %v2710 = vpack.c.b16 %v2506, %v2502
    %v2711 = vpack.c.b16 %v2507, %v2503
    %v2712 = vpack.c.b16 %v2508, %v2504
    %v2713 = vpack.c.b16 %v2513, %v2509
    %v2714 = vpack.c.b16 %v2514, %v2510
    %v2715 = vpack.c.b16 %v2515, %v2511
    %v2716 = vpack.c.b16 %v2516, %v2512
    %v2717 = vpack.c.b16 %v2521, %v2517
    %v2718 = vpack.c.b16 %v2522, %v2518
    %v2719 = vpack.c.b16 %v2523, %v2519
    %v2720 = vpack.c.b16 %v2524, %v2520
    %v2721 = vpack.c.b16 %v2529, %v2525
    %v2722 = vpack.c.b16 %v2530, %v2526
    %v2723 = vpack.c.b16 %v2531, %v2527
    %v2724 = vpack.c.b16 %v2532, %v2528
    %v2725 = vpack.c.b16 %v2537, %v2533
    %v2726 = vpack.c.b16 %v2538, %v2534
    %v2727 = vpack.c.b16 %v2539, %v2535
    %v2728 = vpack.c.b16 %v2540, %v2536
    %v2729 = vpack.c.b16 %v2545, %v2541
    %v2730 = vpack.c.b16 %v2546, %v2542
    %v2731 = vpack.c.b16 %v2547, %v2543
    %v2732 = vpack.c.b16 %v2548, %v2544
    %v2733 = vpack.c.b16 %v2553, %v2549
    %v2734 = vpack.c.b16 %v2554, %v2550
    %v2735 = vpack.c.b16 %v2555, %v2551
    %v2736 = vpack.c.b16 %v2556, %v2552
    %v2737 = vpack.c.b16 %v2561, %v2557
    %v2738 = vpack.c.b16 %v2562, %v2558
    %v2739 = vpack.c.b16 %v2563, %v2559
    %v2740 = vpack.c.b16 %v2564, %v2560
    %v2741 = vpack.c.b16 %v2569, %v2565
    %v2742 = vpack.c.b16 %v2570, %v2566
    %v2743 = vpack.c.b16 %v2571, %v2567
    %v2744 = vpack.c.b16 %v2572, %v2568
    %v2745 = vpack.c.b16 %v2577, %v2573
    %v2746 = vpack.c.b16 %v2578, %v2574
    %v2747 = vpack.c.b16 %v2579, %v2575
    %v2748 = vpack.c.b16 %v2580, %v2576
    %v2749 = vpack.c.b16 %v2585, %v2581
    %v2750 = vpack.c.b16 %v2586, %v2582
    %v2751 = vpack.c.b16 %v2587, %v2583
    %v2752 = vpack.c.b16 %v2588, %v2584
    %v2753 = vpack.c.b16 %v2593, %v2589
    %v2754 = vpack.c.b16 %v2594, %v2590
    %v2755 = vpack.c.b16 %v2595, %v2591
    %v2756 = vpack.c.b16 %v2596, %v2592
    %v2757 = vpack.c.b16 %v2601, %v2597
    %v2758 = vpack.c.b16 %v2602, %v2598
    %v2759 = vpack.c.b16 %v2603, %v2599
    %v2760 = vpack.c.b16 %v2604, %v2600
    %v2761 = vpack.c.b16 %v2609, %v2605
    %v2762 = vpack.c.b16 %v2610, %v2606
    %v2763 = vpack.c.b16 %v2611, %v2607
    %v2764 = vpack.c.b16 %v2612, %v2608
    %v2765 = vpack.c.b16 %v2617, %v2613
    %v2766 = vpack.c.b16 %v2618, %v2614
    %v2767 = vpack.c.b16 %v2619, %v2615
    %v2768 = vpack.c.b16 %v2620, %v2616
    %v2769 = vpack.c.b16 %v2625, %v2621
    %v2770 = vpack.c.b16 %v2626, %v2622
    %v2771 = vpack.c.b16 %v2627, %v2623
    %v2772 = vpack.c.b16 %v2628, %v2624
    %v2773 = vpack.c.b16 %v2633, %v2629
    %v2774 = vpack.c.b16 %v2634, %v2630
    %v2775 = vpack.c.b16 %v2635, %v2631
    %v2776 = vpack.c.b16 %v2636, %v2632
    %v2777 = vpack.c.b16 %v2641, %v2637
    %v2778 = vpack.c.b16 %v2642, %v2638
    %v2779 = vpack.c.b16 %v2643, %v2639
    %v2780 = vpack.c.b16 %v2644, %v2640
    %v2781 = vpack.c.b16 %v2649, %v2645
    %v2782 = vpack.c.b16 %v2650, %v2646
    %v2783 = vpack.c.b16 %v2651, %v2647
    %v2784 = vpack.c.b16 %v2652, %v2648
    %v2785 = vpack.c.b16 %v2657, %v2653
    %v2786 = vpack.c.b16 %v2658, %v2654
    %v2787 = vpack.c.b16 %v2659, %v2655
    %v2788 = vpack.c.b16 %v2660, %v2656
    %2917 = vmatpush.bf16.msra.mxu0 %v2689
    %2918 = vmatpush.bf16.msra.mxu0 %v2685
    %2919 = vmatpush.bf16.msra.mxu0 %v2681
    %2920 = vmatpush.bf16.msra.mxu0 %v2677
    %2921 = vmatpush.bf16.msra.mxu0 %v2673
    %2922 = vmatpush.bf16.msra.mxu0 %v2669
    %2923 = vmatpush.bf16.msra.mxu0 %v2665
    %2924 = vmatpush.bf16.msra.mxu0 %v2661
    %2925 = vmatmul.bf16.gmra.mxu0 %v2135
    %v2926 = vpop.f32.mrf.mxu0
    %v2927 = vadd.f32 %v2269, %v2926
    %v2928 = vpop.f32.mrf.mxu0
    %2929 = vdwg.mxu0
    %2930 = vmatpush.bf16.msra.mxu0 %v2721
    %2931 = vmatpush.bf16.msra.mxu0 %v2717
    %2932 = vmatpush.bf16.msra.mxu0 %v2713
    %2933 = vmatpush.bf16.msra.mxu0 %v2709
    %2934 = vmatpush.bf16.msra.mxu0 %v2705
    %2935 = vmatpush.bf16.msra.mxu0 %v2701
    %2936 = vmatpush.bf16.msra.mxu0 %v2697
    %2937 = vmatpush.bf16.msra.mxu0 %v2693
    %2938 = vmatmul.bf16.gmra.mxu0 %v2136
    %v2939 = vpop.f32.mrf.mxu0
    %v2940 = vadd.f32 %v2927, %v2939
    %v2941 = vpop.f32.mrf.mxu0
    %2942 = vdwg.mxu0
    %2943 = vmatpush.bf16.msra.mxu0 %v2753
    %2944 = vmatpush.bf16.msra.mxu0 %v2749
    %2945 = vmatpush.bf16.msra.mxu0 %v2745
    %2946 = vmatpush.bf16.msra.mxu0 %v2741
    %2947 = vmatpush.bf16.msra.mxu0 %v2737
    %2948 = vmatpush.bf16.msra.mxu0 %v2733
    %2949 = vmatpush.bf16.msra.mxu0 %v2729
    %2950 = vmatpush.bf16.msra.mxu0 %v2725
    %2951 = vmatmul.bf16.gmra.mxu0 %v2137
    %v2952 = vpop.f32.mrf.mxu0
    %v2953 = vadd.f32 %v2940, %v2952
    %v2954 = vpop.f32.mrf.mxu0
    %2955 = vdwg.mxu0
    %2956 = vmatpush.bf16.msra.mxu0 %v2785
    %2957 = vmatpush.bf16.msra.mxu0 %v2781
    %2958 = vmatpush.bf16.msra.mxu0 %v2777
    %2959 = vmatpush.bf16.msra.mxu0 %v2773
    %2960 = vmatpush.bf16.msra.mxu0 %v2769
    %2961 = vmatpush.bf16.msra.mxu0 %v2765
    %2962 = vmatpush.bf16.msra.mxu0 %v2761
    %2963 = vmatpush.bf16.msra.mxu0 %v2757
    %2964 = vmatmul.bf16.gmra.mxu0 %v2138
    %v2965 = vpop.f32.mrf.mxu0
    %v2966 = vadd.f32 %v2953, %v2965
    %v2967 = vpop.f32.mrf.mxu0
    %2968 = vdwg.mxu0
    %2969 = vmatpush.bf16.msra.mxu0 %v2690
    %2970 = vmatpush.bf16.msra.mxu0 %v2686
    %2971 = vmatpush.bf16.msra.mxu0 %v2682
    %2972 = vmatpush.bf16.msra.mxu0 %v2678
    %2973 = vmatpush.bf16.msra.mxu0 %v2674
    %2974 = vmatpush.bf16.msra.mxu0 %v2670
    %2975 = vmatpush.bf16.msra.mxu0 %v2666
    %2976 = vmatpush.bf16.msra.mxu0 %v2662
    %2977 = vmatmul.bf16.gmra.mxu0 %v2135
    %v2978 = vpop.f32.mrf.mxu0
    %v2979 = vadd.f32 %v2270, %v2978
    %v2980 = vpop.f32.mrf.mxu0
    %2981 = vdwg.mxu0
    %2982 = vmatpush.bf16.msra.mxu0 %v2722
    %2983 = vmatpush.bf16.msra.mxu0 %v2718
    %2984 = vmatpush.bf16.msra.mxu0 %v2714
    %2985 = vmatpush.bf16.msra.mxu0 %v2710
    %2986 = vmatpush.bf16.msra.mxu0 %v2706
    %2987 = vmatpush.bf16.msra.mxu0 %v2702
    %2988 = vmatpush.bf16.msra.mxu0 %v2698
    %2989 = vmatpush.bf16.msra.mxu0 %v2694
    %2990 = vmatmul.bf16.gmra.mxu0 %v2136
    %v2991 = vpop.f32.mrf.mxu0
    %v2992 = vadd.f32 %v2979, %v2991
    %v2993 = vpop.f32.mrf.mxu0
    %2994 = vdwg.mxu0
    %2995 = vmatpush.bf16.msra.mxu0 %v2754
    %2996 = vmatpush.bf16.msra.mxu0 %v2750
    %2997 = vmatpush.bf16.msra.mxu0 %v2746
    %2998 = vmatpush.bf16.msra.mxu0 %v2742
    %2999 = vmatpush.bf16.msra.mxu0 %v2738
    %3000 = vmatpush.bf16.msra.mxu0 %v2734
    %3001 = vmatpush.bf16.msra.mxu0 %v2730
    %3002 = vmatpush.bf16.msra.mxu0 %v2726
    %3003 = vmatmul.bf16.gmra.mxu0 %v2137
    %v3004 = vpop.f32.mrf.mxu0
    %v3005 = vadd.f32 %v2992, %v3004
    %v3006 = vpop.f32.mrf.mxu0
    %3007 = vdwg.mxu0
    %3008 = vmatpush.bf16.msra.mxu0 %v2786
    %3009 = vmatpush.bf16.msra.mxu0 %v2782
    %3010 = vmatpush.bf16.msra.mxu0 %v2778
    %3011 = vmatpush.bf16.msra.mxu0 %v2774
    %3012 = vmatpush.bf16.msra.mxu0 %v2770
    %3013 = vmatpush.bf16.msra.mxu0 %v2766
    %3014 = vmatpush.bf16.msra.mxu0 %v2762
    %3015 = vmatpush.bf16.msra.mxu0 %v2758
    %3016 = vmatmul.bf16.gmra.mxu0 %v2138
    %v3017 = vpop.f32.mrf.mxu0
    %v3018 = vadd.f32 %v3005, %v3017
    %v3019 = vpop.f32.mrf.mxu0
    %3020 = vdwg.mxu0
    %3021 = vmatpush.bf16.msra.mxu0 %v2691
    %3022 = vmatpush.bf16.msra.mxu0 %v2687
    %3023 = vmatpush.bf16.msra.mxu0 %v2683
    %3024 = vmatpush.bf16.msra.mxu0 %v2679
    %3025 = vmatpush.bf16.msra.mxu0 %v2675
    %3026 = vmatpush.bf16.msra.mxu0 %v2671
    %3027 = vmatpush.bf16.msra.mxu0 %v2667
    %3028 = vmatpush.bf16.msra.mxu0 %v2663
    %3029 = vmatmul.bf16.gmra.mxu0 %v2135
    %v3030 = vpop.f32.mrf.mxu0
    %v3031 = vadd.f32 %v2271, %v3030
    %v3032 = vpop.f32.mrf.mxu0
    %3033 = vdwg.mxu0
    %3034 = vmatpush.bf16.msra.mxu0 %v2723
    %3035 = vmatpush.bf16.msra.mxu0 %v2719
    %3036 = vmatpush.bf16.msra.mxu0 %v2715
    %3037 = vmatpush.bf16.msra.mxu0 %v2711
    %3038 = vmatpush.bf16.msra.mxu0 %v2707
    %3039 = vmatpush.bf16.msra.mxu0 %v2703
    %3040 = vmatpush.bf16.msra.mxu0 %v2699
    %3041 = vmatpush.bf16.msra.mxu0 %v2695
    %3042 = vmatmul.bf16.gmra.mxu0 %v2136
    %v3043 = vpop.f32.mrf.mxu0
    %v3044 = vadd.f32 %v3031, %v3043
    %v3045 = vpop.f32.mrf.mxu0
    %3046 = vdwg.mxu0
    %3047 = vmatpush.bf16.msra.mxu0 %v2755
    %3048 = vmatpush.bf16.msra.mxu0 %v2751
    %3049 = vmatpush.bf16.msra.mxu0 %v2747
    %3050 = vmatpush.bf16.msra.mxu0 %v2743
    %3051 = vmatpush.bf16.msra.mxu0 %v2739
    %3052 = vmatpush.bf16.msra.mxu0 %v2735
    %3053 = vmatpush.bf16.msra.mxu0 %v2731
    %3054 = vmatpush.bf16.msra.mxu0 %v2727
    %3055 = vmatmul.bf16.gmra.mxu0 %v2137
    %v3056 = vpop.f32.mrf.mxu0
    %v3057 = vadd.f32 %v3044, %v3056
    %v3058 = vpop.f32.mrf.mxu0
    %3059 = vdwg.mxu0
    %3060 = vmatpush.bf16.msra.mxu0 %v2787
    %3061 = vmatpush.bf16.msra.mxu0 %v2783
    %3062 = vmatpush.bf16.msra.mxu0 %v2779
    %3063 = vmatpush.bf16.msra.mxu0 %v2775
    %3064 = vmatpush.bf16.msra.mxu0 %v2771
    %3065 = vmatpush.bf16.msra.mxu0 %v2767
    %3066 = vmatpush.bf16.msra.mxu0 %v2763
    %3067 = vmatpush.bf16.msra.mxu0 %v2759
    %3068 = vmatmul.bf16.gmra.mxu0 %v2138
    %v3069 = vpop.f32.mrf.mxu0
    %v3070 = vadd.f32 %v3057, %v3069
    %v3071 = vpop.f32.mrf.mxu0
    %3072 = vdwg.mxu0
    %3073 = vmatpush.bf16.msra.mxu0 %v2692
    %3074 = vmatpush.bf16.msra.mxu0 %v2688
    %3075 = vmatpush.bf16.msra.mxu0 %v2684
    %3076 = vmatpush.bf16.msra.mxu0 %v2680
    %3077 = vmatpush.bf16.msra.mxu0 %v2676
    %3078 = vmatpush.bf16.msra.mxu0 %v2672
    %3079 = vmatpush.bf16.msra.mxu0 %v2668
    %3080 = vmatpush.bf16.msra.mxu0 %v2664
    %3081 = vmatmul.bf16.gmra.mxu0 %v2135
    %v3082 = vpop.f32.mrf.mxu0
    %v3083 = vadd.f32 %v2272, %v3082
    %v3084 = vpop.f32.mrf.mxu0
    %3085 = vdwg.mxu0
    %3086 = vmatpush.bf16.msra.mxu0 %v2724
    %3087 = vmatpush.bf16.msra.mxu0 %v2720
    %3088 = vmatpush.bf16.msra.mxu0 %v2716
    %3089 = vmatpush.bf16.msra.mxu0 %v2712
    %3090 = vmatpush.bf16.msra.mxu0 %v2708
    %3091 = vmatpush.bf16.msra.mxu0 %v2704
    %3092 = vmatpush.bf16.msra.mxu0 %v2700
    %3093 = vmatpush.bf16.msra.mxu0 %v2696
    %3094 = vmatmul.bf16.gmra.mxu0 %v2136
    %v3095 = vpop.f32.mrf.mxu0
    %v3096 = vadd.f32 %v3083, %v3095
    %v3097 = vpop.f32.mrf.mxu0
    %3098 = vdwg.mxu0
    %3099 = vmatpush.bf16.msra.mxu0 %v2756
    %3100 = vmatpush.bf16.msra.mxu0 %v2752
    %3101 = vmatpush.bf16.msra.mxu0 %v2748
    %3102 = vmatpush.bf16.msra.mxu0 %v2744
    %3103 = vmatpush.bf16.msra.mxu0 %v2740
    %3104 = vmatpush.bf16.msra.mxu0 %v2736
    %3105 = vmatpush.bf16.msra.mxu0 %v2732
    %3106 = vmatpush.bf16.msra.mxu0 %v2728
    %3107 = vmatmul.bf16.gmra.mxu0 %v2137
    %v3108 = vpop.f32.mrf.mxu0
    %v3109 = vadd.f32 %v3096, %v3108
    %v3110 = vpop.f32.mrf.mxu0
    %3111 = vdwg.mxu0
    %3112 = vmatpush.bf16.msra.mxu0 %v2788
    %3113 = vmatpush.bf16.msra.mxu0 %v2784
    %3114 = vmatpush.bf16.msra.mxu0 %v2780
    %3115 = vmatpush.bf16.msra.mxu0 %v2776
    %3116 = vmatpush.bf16.msra.mxu0 %v2772
    %3117 = vmatpush.bf16.msra.mxu0 %v2768
    %3118 = vmatpush.bf16.msra.mxu0 %v2764
    %3119 = vmatpush.bf16.msra.mxu0 %v2760
    %3120 = vmatmul.bf16.gmra.mxu0 %v2138
    %v3121 = vpop.f32.mrf.mxu0
    %v3122 = vadd.f32 %v3109, %v3121
    %v3123 = vpop.f32.mrf.mxu0
    %3124 = vdwg.mxu0
    %v3125 = vmax.f32 %v2966, 0.0
    %v3126 = vmax.f32 %v3018, 0.0
    %v3127 = vmax.f32 %v3070, 0.0
    %v3128 = vmax.f32 %v3122, 0.0
    %s3129 = smul.u32 %s2131, 1
    %s3130 = sshll.u32 %s3129, 4
    %3131 = dma.done %s105, %s3130
    %v3132 = vpack.c.bf16 %v3125, %v3125
    %v3133 = vpack.c.bf16 %v3126, %v3126
    %v3134 = vpack.c.bf16 %v3127, %v3127
    %v3135 = vpack.c.bf16 %v3128, %v3128
    %v3136 = vld [vmem:[#allocation4] sm:$0xf]
    %v3137 = vld [vmem:[#allocation4 + $0x4] sm:$0xf]
    %v3138 = vld [vmem:[#allocation4 + $0x8] sm:$0xf]
    %v3139 = vld [vmem:[#allocation4 + $0xc] sm:$0xf]
    %v3140 = vld [vmem:[#allocation4 + $0x10] sm:$0xf]
    %v3141 = vld [vmem:[#allocation4 + $0x14] sm:$0xf]
    %v3142 = vld [vmem:[#allocation4 + $0x18] sm:$0xf]
    %v3143 = vld [vmem:[#allocation4 + $0x1c] sm:$0xf]
    %v3144 = vld [vmem:[#allocation4 + $0x20] sm:$0xf]
    %v3145 = vld [vmem:[#allocation4 + $0x24] sm:$0xf]
    %v3146 = vld [vmem:[#allocation4 + $0x28] sm:$0xf]
    %v3147 = vld [vmem:[#allocation4 + $0x2c] sm:$0xf]
    %v3148 = vld [vmem:[#allocation4 + $0x30] sm:$0xf]
    %v3149 = vld [vmem:[#allocation4 + $0x34] sm:$0xf]
    %v3150 = vld [vmem:[#allocation4 + $0x38] sm:$0xf]
    %v3151 = vld [vmem:[#allocation4 + $0x3c] sm:$0xf]
    %v3152 = vld [vmem:[#allocation4 + $0x40] sm:$0xf]
    %v3153 = vld [vmem:[#allocation4 + $0x44] sm:$0xf]
    %v3154 = vld [vmem:[#allocation4 + $0x48] sm:$0xf]
    %v3155 = vld [vmem:[#allocation4 + $0x4c] sm:$0xf]
    %v3156 = vld [vmem:[#allocation4 + $0x50] sm:$0xf]
    %v3157 = vld [vmem:[#allocation4 + $0x54] sm:$0xf]
    %v3158 = vld [vmem:[#allocation4 + $0x58] sm:$0xf]
    %v3159 = vld [vmem:[#allocation4 + $0x5c] sm:$0xf]
    %v3160 = vld [vmem:[#allocation4 + $0x60] sm:$0xf]
    %v3161 = vld [vmem:[#allocation4 + $0x64] sm:$0xf]
    %v3162 = vld [vmem:[#allocation4 + $0x68] sm:$0xf]
    %v3163 = vld [vmem:[#allocation4 + $0x6c] sm:$0xf]
    %v3164 = vld [vmem:[#allocation4 + $0x70] sm:$0xf]
    %v3165 = vld [vmem:[#allocation4 + $0x74] sm:$0xf]
    %v3166 = vld [vmem:[#allocation4 + $0x78] sm:$0xf]
    %v3167 = vld [vmem:[#allocation4 + $0x7c] sm:$0xf]
    %v3168 = vld [vmem:[#allocation4 + $0x80] sm:$0xf]
    %v3169 = vld [vmem:[#allocation4 + $0x84] sm:$0xf]
    %v3170 = vld [vmem:[#allocation4 + $0x88] sm:$0xf]
    %v3171 = vld [vmem:[#allocation4 + $0x8c] sm:$0xf]
    %v3172 = vld [vmem:[#allocation4 + $0x90] sm:$0xf]
    %v3173 = vld [vmem:[#allocation4 + $0x94] sm:$0xf]
    %v3174 = vld [vmem:[#allocation4 + $0x98] sm:$0xf]
    %v3175 = vld [vmem:[#allocation4 + $0x9c] sm:$0xf]
    %v3176 = vld [vmem:[#allocation4 + $0xa0] sm:$0xf]
    %v3177 = vld [vmem:[#allocation4 + $0xa4] sm:$0xf]
    %v3178 = vld [vmem:[#allocation4 + $0xa8] sm:$0xf]
    %v3179 = vld [vmem:[#allocation4 + $0xac] sm:$0xf]
    %v3180 = vld [vmem:[#allocation4 + $0xb0] sm:$0xf]
    %v3181 = vld [vmem:[#allocation4 + $0xb4] sm:$0xf]
    %v3182 = vld [vmem:[#allocation4 + $0xb8] sm:$0xf]
    %v3183 = vld [vmem:[#allocation4 + $0xbc] sm:$0xf]
    %v3184 = vld [vmem:[#allocation4 + $0xc0] sm:$0xf]
    %v3185 = vld [vmem:[#allocation4 + $0xc4] sm:$0xf]
    %v3186 = vld [vmem:[#allocation4 + $0xc8] sm:$0xf]
    %v3187 = vld [vmem:[#allocation4 + $0xcc] sm:$0xf]
    %v3188 = vld [vmem:[#allocation4 + $0xd0] sm:$0xf]
    %v3189 = vld [vmem:[#allocation4 + $0xd4] sm:$0xf]
    %v3190 = vld [vmem:[#allocation4 + $0xd8] sm:$0xf]
    %v3191 = vld [vmem:[#allocation4 + $0xdc] sm:$0xf]
    %v3192 = vld [vmem:[#allocation4 + $0xe0] sm:$0xf]
    %v3193 = vld [vmem:[#allocation4 + $0xe4] sm:$0xf]
    %v3194 = vld [vmem:[#allocation4 + $0xe8] sm:$0xf]
    %v3195 = vld [vmem:[#allocation4 + $0xec] sm:$0xf]
    %v3196 = vld [vmem:[#allocation4 + $0xf0] sm:$0xf]
    %v3197 = vld [vmem:[#allocation4 + $0xf4] sm:$0xf]
    %v3198 = vld [vmem:[#allocation4 + $0xf8] sm:$0xf]
    %v3199 = vld [vmem:[#allocation4 + $0xfc] sm:$0xf]
    %v3200 = vld [vmem:[%s8] sm:$0x1]
    %v3202 = vperm.slane %v3200, 0
    %v3268 = vunpack.c.l.b16 %v3136
    %v3269 = vunpack.c.l.b16 %v3137
    %v3270 = vunpack.c.l.b16 %v3138
    %v3271 = vunpack.c.l.b16 %v3139
    %v3272 = vunpack.c.l.b16 %v3140
    %v3273 = vunpack.c.l.b16 %v3141
    %v3274 = vunpack.c.l.b16 %v3142
    %v3275 = vunpack.c.l.b16 %v3143
    %v3276 = vunpack.c.l.b16 %v3144
    %v3277 = vunpack.c.l.b16 %v3145
    %v3278 = vunpack.c.l.b16 %v3146
    %v3279 = vunpack.c.l.b16 %v3147
    %v3280 = vunpack.c.l.b16 %v3148
    %v3281 = vunpack.c.l.b16 %v3149
    %v3282 = vunpack.c.l.b16 %v3150
    %v3283 = vunpack.c.l.b16 %v3151
    %v3284 = vunpack.c.l.b16 %v3152
    %v3285 = vunpack.c.l.b16 %v3153
    %v3286 = vunpack.c.l.b16 %v3154
    %v3287 = vunpack.c.l.b16 %v3155
    %v3288 = vunpack.c.l.b16 %v3156
    %v3289 = vunpack.c.l.b16 %v3157
    %v3290 = vunpack.c.l.b16 %v3158
    %v3291 = vunpack.c.l.b16 %v3159
    %v3292 = vunpack.c.l.b16 %v3160
    %v3293 = vunpack.c.l.b16 %v3161
    %v3294 = vunpack.c.l.b16 %v3162
    %v3295 = vunpack.c.l.b16 %v3163
    %v3296 = vunpack.c.l.b16 %v3164
    %v3297 = vunpack.c.l.b16 %v3165
    %v3298 = vunpack.c.l.b16 %v3166
    %v3299 = vunpack.c.l.b16 %v3167
    %v3300 = vunpack.c.l.b16 %v3168
    %v3301 = vunpack.c.l.b16 %v3169
    %v3302 = vunpack.c.l.b16 %v3170
    %v3303 = vunpack.c.l.b16 %v3171
    %v3304 = vunpack.c.l.b16 %v3172
    %v3305 = vunpack.c.l.b16 %v3173
    %v3306 = vunpack.c.l.b16 %v3174
    %v3307 = vunpack.c.l.b16 %v3175
    %v3308 = vunpack.c.l.b16 %v3176
    %v3309 = vunpack.c.l.b16 %v3177
    %v3310 = vunpack.c.l.b16 %v3178
    %v3311 = vunpack.c.l.b16 %v3179
    %v3312 = vunpack.c.l.b16 %v3180
    %v3313 = vunpack.c.l.b16 %v3181
    %v3314 = vunpack.c.l.b16 %v3182
    %v3315 = vunpack.c.l.b16 %v3183
    %v3316 = vunpack.c.l.b16 %v3184
    %v3317 = vunpack.c.l.b16 %v3185
    %v3318 = vunpack.c.l.b16 %v3186
    %v3319 = vunpack.c.l.b16 %v3187
    %v3320 = vunpack.c.l.b16 %v3188
    %v3321 = vunpack.c.l.b16 %v3189
    %v3322 = vunpack.c.l.b16 %v3190
    %v3323 = vunpack.c.l.b16 %v3191
    %v3324 = vunpack.c.l.b16 %v3192
    %v3325 = vunpack.c.l.b16 %v3193
    %v3326 = vunpack.c.l.b16 %v3194
    %v3327 = vunpack.c.l.b16 %v3195
    %v3328 = vunpack.c.l.b16 %v3196
    %v3329 = vunpack.c.l.b16 %v3197
    %v3330 = vunpack.c.l.b16 %v3198
    %v3331 = vunpack.c.l.b16 %v3199
    %v3332 = vpack.c.b16 %v3269, %v3268
    %v3333 = vpack.c.b16 %v3271, %v3270
    %v3334 = vpack.c.b16 %v3273, %v3272
    %v3335 = vpack.c.b16 %v3275, %v3274
    %v3336 = vpack.c.b16 %v3277, %v3276
    %v3337 = vpack.c.b16 %v3279, %v3278
    %v3338 = vpack.c.b16 %v3281, %v3280
    %v3339 = vpack.c.b16 %v3283, %v3282
    %v3340 = vpack.c.b16 %v3285, %v3284
    %v3341 = vpack.c.b16 %v3287, %v3286
    %v3342 = vpack.c.b16 %v3289, %v3288
    %v3343 = vpack.c.b16 %v3291, %v3290
    %v3344 = vpack.c.b16 %v3293, %v3292
    %v3345 = vpack.c.b16 %v3295, %v3294
    %v3346 = vpack.c.b16 %v3297, %v3296
    %v3347 = vpack.c.b16 %v3299, %v3298
    %v3348 = vpack.c.b16 %v3301, %v3300
    %v3349 = vpack.c.b16 %v3303, %v3302
    %v3350 = vpack.c.b16 %v3305, %v3304
    %v3351 = vpack.c.b16 %v3307, %v3306
    %v3352 = vpack.c.b16 %v3309, %v3308
    %v3353 = vpack.c.b16 %v3311, %v3310
    %v3354 = vpack.c.b16 %v3313, %v3312
    %v3355 = vpack.c.b16 %v3315, %v3314
    %v3356 = vpack.c.b16 %v3317, %v3316
    %v3357 = vpack.c.b16 %v3319, %v3318
    %v3358 = vpack.c.b16 %v3321, %v3320
    %v3359 = vpack.c.b16 %v3323, %v3322
    %v3360 = vpack.c.b16 %v3325, %v3324
    %v3361 = vpack.c.b16 %v3327, %v3326
    %v3362 = vpack.c.b16 %v3329, %v3328
    %v3363 = vpack.c.b16 %v3331, %v3330
    %3396 = vmatpush.bf16.msra.mxu0 %v3339
    %3397 = vmatpush.bf16.msra.mxu0 %v3338
    %3398 = vmatpush.bf16.msra.mxu0 %v3337
    %3399 = vmatpush.bf16.msra.mxu0 %v3336
    %3400 = vmatpush.bf16.msra.mxu0 %v3335
    %3401 = vmatpush.bf16.msra.mxu0 %v3334
    %3402 = vmatpush.bf16.msra.mxu0 %v3333
    %3403 = vmatpush.bf16.msra.mxu0 %v3332
    %3404 = vmatmul.bf16.gmra.mxu0 %v3132
    %v3405 = vpop.f32.mrf.mxu0
    %v3406 = vadd.f32 %v3202, %v3405
    %v3407 = vpop.f32.mrf.mxu0
    %3408 = vdwg.mxu0
    %3409 = vmatpush.bf16.msra.mxu0 %v3347
    %3410 = vmatpush.bf16.msra.mxu0 %v3346
    %3411 = vmatpush.bf16.msra.mxu0 %v3345
    %3412 = vmatpush.bf16.msra.mxu0 %v3344
    %3413 = vmatpush.bf16.msra.mxu0 %v3343
    %3414 = vmatpush.bf16.msra.mxu0 %v3342
    %3415 = vmatpush.bf16.msra.mxu0 %v3341
    %3416 = vmatpush.bf16.msra.mxu0 %v3340
    %3417 = vmatmul.bf16.gmra.mxu0 %v3133
    %v3418 = vpop.f32.mrf.mxu0
    %v3419 = vadd.f32 %v3406, %v3418
    %v3420 = vpop.f32.mrf.mxu0
    %3421 = vdwg.mxu0
    %3422 = vmatpush.bf16.msra.mxu0 %v3355
    %3423 = vmatpush.bf16.msra.mxu0 %v3354
    %3424 = vmatpush.bf16.msra.mxu0 %v3353
    %3425 = vmatpush.bf16.msra.mxu0 %v3352
    %3426 = vmatpush.bf16.msra.mxu0 %v3351
    %3427 = vmatpush.bf16.msra.mxu0 %v3350
    %3428 = vmatpush.bf16.msra.mxu0 %v3349
    %3429 = vmatpush.bf16.msra.mxu0 %v3348
    %3430 = vmatmul.bf16.gmra.mxu0 %v3134
    %v3431 = vpop.f32.mrf.mxu0
    %v3432 = vadd.f32 %v3419, %v3431
    %v3433 = vpop.f32.mrf.mxu0
    %3434 = vdwg.mxu0
    %3435 = vmatpush.bf16.msra.mxu0 %v3363
    %3436 = vmatpush.bf16.msra.mxu0 %v3362
    %3437 = vmatpush.bf16.msra.mxu0 %v3361
    %3438 = vmatpush.bf16.msra.mxu0 %v3360
    %3439 = vmatpush.bf16.msra.mxu0 %v3359
    %3440 = vmatpush.bf16.msra.mxu0 %v3358
    %3441 = vmatpush.bf16.msra.mxu0 %v3357
    %3442 = vmatpush.bf16.msra.mxu0 %v3356
    %3443 = vmatmul.bf16.gmra.mxu0 %v3135
    %v3444 = vpop.f32.mrf.mxu0
    %v3445 = vadd.f32 %v3432, %v3444
    %v3446 = vpop.f32.mrf.mxu0
    %3447 = vdwg.mxu0
    %3448 = vadd.xlane.f32.xlu0 %v3445
    %v3449 = vpop.xlane.xlu0 %3448
    %v3450 = vrcp.pop 128.0
    %v3451 = vmul.f32 128.0, %v3450
    %v3452 = vsub.f32 1.0, %v3451
    %v3453 = vmul.f32 %v3450, %v3452
    %v3454 = vadd.f32 %v3450, %v3453
    %vm3455 = vweird.f32 %v3450
    %v3456 = vsel %vm3455, %v3450, %v3454
    %v3457 = vmul.f32 %v3449, %v3456
    %v3458 = vsub.f32 %v3445, %v3457
    %v3459 = vmul.f32 %v3458, %v3458
    %3460 = vadd.xlane.f32.xlu0 %v3459
    %v3461 = vpop.xlane.xlu0 %3460
    %v3462 = vmul.f32 %v3461, %v3456
    %v3463 = vadd.f32 %v3462, 1e-05
    %v3464 = vrsqrt.pop %v3463
    %v3465 = vmul.f32 %v3464, %v3463
    %v3466 = vmul.f32 %v3465, %v3464
    %v3467 = vmul.f32 0.5, %v3466
    %v3468 = vsub.f32 1.5, %v3467
    %v3469 = vmul.f32 %v3464, %v3468
    %vm3470 = vweird.f32 %v3463
    %vm3471 = vweird.f32 %v3464
    %vm3472 = vmor %vm3470, %vm3471
    %v3473 = vsel %vm3472, %v3464, %v3469
    %v3474 = vmul.f32 %v3458, %v3473
    %v3475 = vld [vmem:[%s9] sm:$0x1]
    %v3477 = vperm.slane %v3475, 0
    %v3479 = vmul.f32 %v3474, %v3477
    %v3480 = vld [vmem:[%s10] sm:$0x1]
    %v3482 = vperm.slane %v3480, 0
    %v3484 = vadd.f32 %v3479, %v3482
    %3485 = vst [vmem:[#allocation12] sm:$0xff] %v3484
    // Predicated region
    $region58: #{tpu_custom_call.1} parent=1 // pred_check
      _
    $region59: #{tpu_custom_call.1} parent=1 // pred_check_branch
      %3487 = sbr.rel (0) target = $region61
    $region60: #{tpu_custom_call.1} parent=1 // pred_region
      %3489 = vsyncadd [#allocation8], 0
      %s3491 = sshll.u32 [#allocation12], 4
      %s3492 = int_to_ptr.vmem [resolvable:$true] %s3491
      %s3493 = sshll.u32 %s11, 4
      %s3494 = int_to_ptr.hbm [resolvable:$true] %s3493
      %3496 = dma.vmem_to_hbm [thread:$0]  %s3492, 128, %s3494, [#allocation8]
    $region61: #{tpu_custom_call.1} parent=1 // pred_fallthru
      _
    // Predicated region
    $region62: #{tpu_custom_call.1} parent=1 // pred_check
      _
    $region63: #{tpu_custom_call.1} parent=1 // pred_check_branch
      %3498 = sbr.rel (0) target = $region65
    $region64: #{tpu_custom_call.1} parent=1 // pred_region
      %3500 = dma.done [#allocation8], 128
    $region65: #{tpu_custom_call.1} parent=1 // pred_fallthru
      _
    %3501 = vsyncpa [#allocation7], 1
    %3502 = vsyncpa [#allocation10], 1
    %3503 = vsyncpa [#allocation8], 1
  %3504 = vsyncmov [#allocation5]
  %s3505 = vpop.sfrf %3504
  %p3506 = scmp.eq.s32.totalorder %s3505, 0
  %p3507 = pneg %p3506
  %3509 = shalt.err (%p3507)
  %s3510 = scalar_lea.sflag [#allocation5], 1
  %3511 = vsyncmov %s3510
  %s3512 = vpop.sfrf %3511
  %p3513 = scmp.eq.s32.totalorder %s3512, 0
  %p3514 = pneg %p3513
  %3516 = shalt.err (%p3514)
  %s3517 = scalar_lea.sflag [#allocation5], 2
  %3518 = vsyncmov %s3517
  %s3519 = vpop.sfrf %3518
  %p3520 = scmp.eq.s32.totalorder %s3519, 0
  %p3521 = pneg %p3520
  %3523 = shalt.err (%p3521)

</llo_original>
